<compile_context>
chip_gen: v5e
topology: v5e:2x2
jax: 0.10.0
libtpu: 0.0.40
codegen_flags: <defaults>
</compile_context>

<pallas_src>
import functools

import numpy as np
import jax
import jax.numpy as jnp
from jax.experimental import pallas as pl
from jax.experimental.pallas import tpu as pltpu


# ----------------------------------------------------------------------------
# Fused Unet kernel: one batch element per grid step, everything as VMEM/vreg
# values, all heavy ops are 2-D MXU matmuls with spatial on the lane axis.
# ----------------------------------------------------------------------------
def _fused_unet_kernel(x_ref, w1_ref, b1_ref, w2_ref, b2_ref, w3_ref, b3_ref,
                       w4_ref, b4_ref, e_ref, s_ref, u_ref, t_ref,
                       o_ref, *, H, W):
    """Minimal-Unet forward for one batch element.

    Layout: activations are (C, spatial) with the spatial extent flattened on
    lanes at row stride W+2 ("strided" layout).  Zero-padded feature maps are
    (C, (H+3)*(W+2)) values produced by the E/S/U placement matmuls, so the
    1-px conv halo is always correct without any buffer zeroing or masking.
    """
    W2 = W + 2                        # padded row stride (full res)
    Hh, Wh = H // 2, W // 2
    Wh2 = Wh + 2                      # padded row stride (half res)
    L = H * W2                        # strided spatial length (full res)
    Lh = Hh * Wh2                     # strided spatial length (half res)

    def im2col(src, stride, length):
        # 9 shifted windows of the zero-padded map, stacked tap-major along
        # the sublane axis -> (9*C, length): one deep-K MXU operand per conv.
        taps = [src[:, kh * stride + kw:kh * stride + kw + length]
                for kh in range(3) for kw in range(3)]
        c = src.shape[0]
        return jnp.stack(taps, axis=0).reshape(9 * c, length)

    def conv_relu(cols, w_r, b_r):
        y = jnp.dot(w_r[...], cols, preferred_element_type=jnp.float32)
        return jnp.maximum(y + b_r[...], 0.0)         # bias is (Cout, 1)

    x = x_ref[0]                                       # (Cin_p, (H+3)*(W+2))

    # ---- encoder: conv3x3 + ReLU (single K=9*Cin_p matmul) -----------------
    e1 = conv_relu(im2col(x, W2, L), w1_ref, b1_ref)   # (c1, L) strided
    # place into a zero-padded map; junk columns are killed by E's zero rows
    e1_pad = jnp.dot(e1, e_ref[...], preferred_element_type=jnp.float32)

    # ---- 2x2 max pool: 4 shifted windows + max, compacted & re-padded by S -
    i0 = W2 + 1                                        # flat index of pixel (0,0)
    nw = e1_pad[:, i0:i0 + L]
    ne = e1_pad[:, i0 + 1:i0 + 1 + L]
    sw = e1_pad[:, i0 + W2:i0 + W2 + L]
    se = e1_pad[:, i0 + W2 + 1:i0 + W2 + 1 + L]
    vmax = jnp.maximum(jnp.maximum(nw, ne), jnp.maximum(sw, se))
    p1_pad = jnp.dot(vmax, s_ref[...], preferred_element_type=jnp.float32)

    # ---- bottleneck: conv3x3 + ReLU -----------------------------------------
    e2 = conv_relu(im2col(p1_pad, Wh2, Lh), w2_ref, b2_ref)    # (c2, Lh)

    # ---- 2x nearest upsample + zero padding in one placement matmul --------
    up_pad = jnp.dot(e2, u_ref[...], preferred_element_type=jnp.float32)

    # ---- decoder: conv3x3 over [up || e1]; the concat only extends K -------
    cols3 = jnp.concatenate(
        [im2col(up_pad, W2, L), im2col(e1_pad, W2, L)], axis=0)
    d1 = conv_relu(cols3, w3_ref, b3_ref)                      # (c1, L)

    # ---- 1x1 head (no transpose), then strided -> dense (H*W) lanes via T --
    logit_s = jnp.dot(w4_ref[...], d1, preferred_element_type=jnp.float32)
    logit = jnp.dot(logit_s, t_ref[...],
                    preferred_element_type=jnp.float32) + b4_ref[...]
    o_ref[0] = logit.astype(o_ref.dtype)               # (1, H*W) lane-dense


# ----------------------------------------------------------------------------
# Constant 0/1 placement matrices (built once per shape, folded at trace time)
# ----------------------------------------------------------------------------
def _placement_matrices(H, W):
    W2 = W + 2
    Hh, Wh = H // 2, W // 2
    Wh2 = Wh + 2
    L, Lh = H * W2, Hh * Wh2
    padlen = (H + 3) * W2
    padlen_h = (Hh + 3) * Wh2

    E = np.zeros((L, padlen), np.float32)     # strided act -> zero-padded map
    T = np.zeros((L, H * W), np.float32)      # strided act -> dense H*W lanes
    for h in range(H):
        for w in range(W):
            E[h * W2 + w, (h + 1) * W2 + (w + 1)] = 1.0
            T[h * W2 + w, h * W + w] = 1.0

    S = np.zeros((L, padlen_h), np.float32)   # 2x2-pool compaction + padding
    U = np.zeros((Lh, padlen), np.float32)    # 2x nearest upsample + padding
    for hh in range(Hh):
        for ww in range(Wh):
            S[(2 * hh) * W2 + 2 * ww, (hh + 1) * Wh2 + (ww + 1)] = 1.0
            for dh in range(2):
                for dw in range(2):
                    U[hh * Wh2 + ww,
                      (2 * hh + dh + 1) * W2 + (2 * ww + dw + 1)] = 1.0
    return jnp.asarray(E), jnp.asarray(S), jnp.asarray(U), jnp.asarray(T)


# ----------------------------------------------------------------------------
# Parameters (deterministic, synthetic) and forward wrapper
# ----------------------------------------------------------------------------
def init_params(key, in_ch, c1=8, c2=16):
    ks = jax.random.split(key, 4)

    def conv_w(k, kh, kw, cin, cout):
        fan_in = kh * kw * cin
        return (jax.random.normal(k, (kh, kw, cin, cout), jnp.float32)
                / jnp.sqrt(fan_in))

    return {
        "w1": conv_w(ks[0], 3, 3, in_ch, c1),   "b1": jnp.zeros((c1,), jnp.float32),
        "w2": conv_w(ks[1], 3, 3, c1, c2),      "b2": jnp.zeros((c2,), jnp.float32),
        "w3": conv_w(ks[2], 3, 3, c2 + c1, c1), "b3": jnp.zeros((c1,), jnp.float32),
        "w4": (jax.random.normal(ks[3], (c1, 1), jnp.float32) / jnp.sqrt(c1)),
        "b4": jnp.zeros((1,), jnp.float32),
    }


def seg_model_forward(params, s2_bands, dem, use_elevation=True):
    """Mirrors SegModel.forward.

    s2_bands: (N, C_s2, H, W)  NCHW (batch['s2_bands'])
    dem:      (N, H, W)              (batch['dem'])
    returns:  (N, 1, H, W) logits    (like the smp Unet with classes=1)
    """
    inputs = [s2_bands]
    if use_elevation:
        inputs.append(dem[:, None, :, :])
    x = jnp.concatenate(inputs, axis=1).astype(jnp.float32)   # (N, Cin, H, W)
    N, Cin, H, W = x.shape
    assert H % 2 == 0 and W % 2 == 0, "minimal Unet needs even spatial dims"

    w1 = params["w1"].astype(jnp.float32)
    w2 = params["w2"].astype(jnp.float32)
    w3 = params["w3"].astype(jnp.float32)
    c1, c2 = w1.shape[-1], w2.shape[-1]
    cin_p = ((Cin + 7) // 8) * 8          # pad input channels to a sublane tile

    # --- weights packed to 2-D (Cout, 9*Cin), tap-major / channel-minor -----
    def pack(wc):                          # (3,3,ci,co) -> (co, 9*ci)
        return jnp.transpose(wc, (3, 0, 1, 2)).reshape(wc.shape[-1], -1)

    w1p = pack(jnp.pad(w1, ((0, 0), (0, 0), (0, cin_p - Cin), (0, 0))))
    w2p = pack(w2)
    # decoder conv acts on concat([upsampled_bottleneck, encoder_skip])
    w3p = jnp.concatenate([pack(w3[:, :, :c2, :]), pack(w3[:, :, c2:, :])],
                          axis=1)
    w4t = params["w4"].astype(jnp.float32).reshape(1, c1)
    b1 = params["b1"].astype(jnp.float32).reshape(c1, 1)
    b2 = params["b2"].astype(jnp.float32).reshape(c2, 1)
    b3 = params["b3"].astype(jnp.float32).reshape(c1, 1)
    b4 = params["b4"].astype(jnp.float32).reshape(1, 1)

    # --- input pre-padded + lane-flattened: (N, cin_p, (H+3)*(W+2)) ---------
    W2 = W + 2
    padlen = (H + 3) * W2
    xp = jnp.pad(x, ((0, 0), (0, cin_p - Cin), (1, 1), (1, 1)))
    xp = xp.reshape(N, cin_p, (H + 2) * W2)
    xp = jnp.pad(xp, ((0, 0), (0, 0), (0, padlen - (H + 2) * W2)))

    E, S, U, T = _placement_matrices(H, W)

    kernel = functools.partial(_fused_unet_kernel, H=H, W=W)

    def _const(a):   # resident across all grid steps; no second buffer
        return pl.BlockSpec(a.shape, lambda n: (0, 0),
                            pipeline_mode=pl.Buffered(1))

    out = pl.pallas_call(
        kernel,
        out_shape=jax.ShapeDtypeStruct((N, 1, H * W), jnp.float32),
        grid_spec=pltpu.PrefetchScalarGridSpec(
            num_scalar_prefetch=0,
            grid=(N,),
            in_specs=[
                pl.BlockSpec((1, cin_p, padlen), lambda n: (n, 0, 0)),
                _const(w1p), _const(b1), _const(w2p), _const(b2),
                _const(w3p), _const(b3), _const(w4t), _const(b4),
                _const(E), _const(S), _const(U), _const(T),
            ],
            out_specs=pl.BlockSpec((1, 1, H * W), lambda n: (n, 0, 0)),
            scratch_shapes=[]),
        compiler_params=pltpu.CompilerParams(
            dimension_semantics=("parallel",)),   # batch elems -> v7x TCs
    )(xp, w1p, b1, w2p, b2, w3p, b3, w4t, b4, E, S, U, T)

    return out.reshape(N, 1, H, W)


if __name__ == "__main__":
    key = jax.random.PRNGKey(0)
    k_s2, k_dem, k_par = jax.random.split(key, 3)

    N, C_S2, H, W = 2, 4, 16, 16          # 4 S2 bands + 1 elevation channel
    use_elevation = True
    in_ch = C_S2 + (1 if use_elevation else 0)

    s2_bands = jax.random.normal(k_s2, (N, C_S2, H, W), jnp.float32)
    dem = jax.random.normal(k_dem, (N, H, W), jnp.float32)
    params = init_params(k_par, in_ch)

    fwd = jax.jit(functools.partial(seg_model_forward,
                                    use_elevation=use_elevation))
    preds = fwd(params, s2_bands, dem)
    jax.block_until_ready(preds)

    assert preds.shape == (N, 1, H, W), preds.shape
    assert preds.dtype == jnp.float32
    print("KERNEL_OK")
</pallas_src>

<mosaic_0001>
module attributes {stable_mosaic.version = 11 : i64} {
  func.func @_fused_unet_kernel(%arg0: i32, %arg1: memref<1x8x342xf32, #tpu.memory_space<vmem>>, %arg2: memref<8x72xf32, #tpu.memory_space<vmem>>, %arg3: memref<8x1xf32, #tpu.memory_space<vmem>>, %arg4: memref<16x72xf32, #tpu.memory_space<vmem>>, %arg5: memref<16x1xf32, #tpu.memory_space<vmem>>, %arg6: memref<8x216xf32, #tpu.memory_space<vmem>>, %arg7: memref<8x1xf32, #tpu.memory_space<vmem>>, %arg8: memref<1x8xf32, #tpu.memory_space<vmem>>, %arg9: memref<1x1xf32, #tpu.memory_space<vmem>>, %arg10: memref<288x342xf32, #tpu.memory_space<vmem>>, %arg11: memref<288x110xf32, #tpu.memory_space<vmem>>, %arg12: memref<80x342xf32, #tpu.memory_space<vmem>>, %arg13: memref<288x256xf32, #tpu.memory_space<vmem>>, %arg14: memref<1x1x256xf32, #tpu.memory_space<vmem>>) attributes {dimension_semantics = [#tpu.dimension_semantics<parallel>], iteration_bounds = array<i64: 2>, scalar_prefetch = 0 : i64, scratch_operands = 0 : i64, tpu.core_type = #tpu.core_type<tc>, window_params = [{transform_indices = @transform_0, window_bounds = array<i64: 1, 8, 342>}, {pipeline_mode = #tpu.pipeline_mode<synchronous>, transform_indices = @transform_1, window_bounds = array<i64: 8, 72>}, {pipeline_mode = #tpu.pipeline_mode<synchronous>, transform_indices = @transform_2, window_bounds = array<i64: 8, 1>}, {pipeline_mode = #tpu.pipeline_mode<synchronous>, transform_indices = @transform_3, window_bounds = array<i64: 16, 72>}, {pipeline_mode = #tpu.pipeline_mode<synchronous>, transform_indices = @transform_4, window_bounds = array<i64: 16, 1>}, {pipeline_mode = #tpu.pipeline_mode<synchronous>, transform_indices = @transform_5, window_bounds = array<i64: 8, 216>}, {pipeline_mode = #tpu.pipeline_mode<synchronous>, transform_indices = @transform_6, window_bounds = array<i64: 8, 1>}, {pipeline_mode = #tpu.pipeline_mode<synchronous>, transform_indices = @transform_7, window_bounds = array<i64: 1, 8>}, {pipeline_mode = #tpu.pipeline_mode<synchronous>, transform_indices = @transform_8, window_bounds = array<i64: 1, 1>}, {pipeline_mode = #tpu.pipeline_mode<synchronous>, transform_indices = @transform_9, window_bounds = array<i64: 288, 342>}, {pipeline_mode = #tpu.pipeline_mode<synchronous>, transform_indices = @transform_10, window_bounds = array<i64: 288, 110>}, {pipeline_mode = #tpu.pipeline_mode<synchronous>, transform_indices = @transform_11, window_bounds = array<i64: 80, 342>}, {pipeline_mode = #tpu.pipeline_mode<synchronous>, transform_indices = @transform_12, window_bounds = array<i64: 288, 256>}, {transform_indices = @transform_13, window_bounds = array<i64: 1, 1, 256>}]} {
    %c0 = arith.constant 0 : index
    %c0_0 = arith.constant 0 : index
    %c0_1 = arith.constant 0 : index
    %0 = vector.load %arg1[%c0, %c0_0, %c0_1] : memref<1x8x342xf32, #tpu.memory_space<vmem>>, vector<1x8x342xf32>
    %1 = vector.shape_cast %0 : vector<1x8x342xf32> to vector<8x342xf32>
    %2 = vector.extract_strided_slice %1 {offsets = [0, 0], sizes = [8, 288], strides = [1, 1]} : vector<8x342xf32> to vector<8x288xf32>
    %3 = vector.extract_strided_slice %1 {offsets = [0, 1], sizes = [8, 288], strides = [1, 1]} : vector<8x342xf32> to vector<8x288xf32>
    %4 = vector.extract_strided_slice %1 {offsets = [0, 2], sizes = [8, 288], strides = [1, 1]} : vector<8x342xf32> to vector<8x288xf32>
    %5 = vector.extract_strided_slice %1 {offsets = [0, 18], sizes = [8, 288], strides = [1, 1]} : vector<8x342xf32> to vector<8x288xf32>
    %6 = vector.extract_strided_slice %1 {offsets = [0, 19], sizes = [8, 288], strides = [1, 1]} : vector<8x342xf32> to vector<8x288xf32>
    %7 = vector.extract_strided_slice %1 {offsets = [0, 20], sizes = [8, 288], strides = [1, 1]} : vector<8x342xf32> to vector<8x288xf32>
    %8 = vector.extract_strided_slice %1 {offsets = [0, 36], sizes = [8, 288], strides = [1, 1]} : vector<8x342xf32> to vector<8x288xf32>
    %9 = vector.extract_strided_slice %1 {offsets = [0, 37], sizes = [8, 288], strides = [1, 1]} : vector<8x342xf32> to vector<8x288xf32>
    %10 = vector.extract_strided_slice %1 {offsets = [0, 38], sizes = [8, 288], strides = [1, 1]} : vector<8x342xf32> to vector<8x288xf32>
    %11 = vector.shape_cast %2 : vector<8x288xf32> to vector<1x8x288xf32>
    %12 = vector.shape_cast %3 : vector<8x288xf32> to vector<1x8x288xf32>
    %13 = vector.shape_cast %4 : vector<8x288xf32> to vector<1x8x288xf32>
    %14 = vector.shape_cast %5 : vector<8x288xf32> to vector<1x8x288xf32>
    %15 = vector.shape_cast %6 : vector<8x288xf32> to vector<1x8x288xf32>
    %16 = vector.shape_cast %7 : vector<8x288xf32> to vector<1x8x288xf32>
    %17 = vector.shape_cast %8 : vector<8x288xf32> to vector<1x8x288xf32>
    %18 = vector.shape_cast %9 : vector<8x288xf32> to vector<1x8x288xf32>
    %19 = vector.shape_cast %10 : vector<8x288xf32> to vector<1x8x288xf32>
    %20 = tpu.concatenate %11, %12, %13, %14, %15, %16, %17, %18, %19 in 0 : vector<1x8x288xf32>, vector<1x8x288xf32>, vector<1x8x288xf32>, vector<1x8x288xf32>, vector<1x8x288xf32>, vector<1x8x288xf32>, vector<1x8x288xf32>, vector<1x8x288xf32>, vector<1x8x288xf32> -> vector<9x8x288xf32>
    %21 = vector.shape_cast %20 : vector<9x8x288xf32> to vector<72x288xf32>
    %c0_2 = arith.constant 0 : index
    %c0_3 = arith.constant 0 : index
    %22 = vector.load %arg2[%c0_2, %c0_3] : memref<8x72xf32, #tpu.memory_space<vmem>>, vector<8x72xf32>
    %cst = arith.constant dense<0.000000e+00> : vector<8x288xf32>
    %23 = tpu.matmul %22, %21, %cst {dimension_numbers = #tpu.dot_dimension_numbers<[1], [0], [0], [1], [0, 0, 1, 1], [], []>} : vector<8x72xf32>, vector<72x288xf32>, vector<8x288xf32> -> vector<8x288xf32>
    %c0_4 = arith.constant 0 : index
    %c0_5 = arith.constant 0 : index
    %24 = vector.load %arg3[%c0_4, %c0_5] : memref<8x1xf32, #tpu.memory_space<vmem>>, vector<8x1xf32>
    %25 = vector.broadcast %24 : vector<8x1xf32> to vector<8x288xf32>
    %26 = arith.addf %23, %25 : vector<8x288xf32>
    %cst_6 = arith.constant 0.000000e+00 : f32
    %27 = vector.broadcast %cst_6 : f32 to vector<8x288xf32>
    %28 = arith.maximumf %26, %27 : vector<8x288xf32>
    %c0_7 = arith.constant 0 : index
    %c0_8 = arith.constant 0 : index
    %29 = vector.load %arg10[%c0_7, %c0_8] : memref<288x342xf32, #tpu.memory_space<vmem>>, vector<288x342xf32>
    %cst_9 = arith.constant dense<0.000000e+00> : vector<8x342xf32>
    %30 = tpu.matmul %28, %29, %cst_9 {dimension_numbers = #tpu.dot_dimension_numbers<[1], [0], [0], [1], [0, 0, 1, 1], [], []>} : vector<8x288xf32>, vector<288x342xf32>, vector<8x342xf32> -> vector<8x342xf32>
    %31 = vector.extract_strided_slice %30 {offsets = [0, 19], sizes = [8, 288], strides = [1, 1]} : vector<8x342xf32> to vector<8x288xf32>
    %32 = vector.extract_strided_slice %30 {offsets = [0, 20], sizes = [8, 288], strides = [1, 1]} : vector<8x342xf32> to vector<8x288xf32>
    %33 = vector.extract_strided_slice %30 {offsets = [0, 37], sizes = [8, 288], strides = [1, 1]} : vector<8x342xf32> to vector<8x288xf32>
    %34 = vector.extract_strided_slice %30 {offsets = [0, 38], sizes = [8, 288], strides = [1, 1]} : vector<8x342xf32> to vector<8x288xf32>
    %35 = arith.maximumf %31, %32 : vector<8x288xf32>
    %36 = arith.maximumf %33, %34 : vector<8x288xf32>
    %37 = arith.maximumf %35, %36 : vector<8x288xf32>
    %c0_10 = arith.constant 0 : index
    %c0_11 = arith.constant 0 : index
    %38 = vector.load %arg11[%c0_10, %c0_11] : memref<288x110xf32, #tpu.memory_space<vmem>>, vector<288x110xf32>
    %cst_12 = arith.constant dense<0.000000e+00> : vector<8x110xf32>
    %39 = tpu.matmul %37, %38, %cst_12 {dimension_numbers = #tpu.dot_dimension_numbers<[1], [0], [0], [1], [0, 0, 1, 1], [], []>} : vector<8x288xf32>, vector<288x110xf32>, vector<8x110xf32> -> vector<8x110xf32>
    %40 = vector.extract_strided_slice %39 {offsets = [0, 0], sizes = [8, 80], strides = [1, 1]} : vector<8x110xf32> to vector<8x80xf32>
    %41 = vector.extract_strided_slice %39 {offsets = [0, 1], sizes = [8, 80], strides = [1, 1]} : vector<8x110xf32> to vector<8x80xf32>
    %42 = vector.extract_strided_slice %39 {offsets = [0, 2], sizes = [8, 80], strides = [1, 1]} : vector<8x110xf32> to vector<8x80xf32>
    %43 = vector.extract_strided_slice %39 {offsets = [0, 10], sizes = [8, 80], strides = [1, 1]} : vector<8x110xf32> to vector<8x80xf32>
    %44 = vector.extract_strided_slice %39 {offsets = [0, 11], sizes = [8, 80], strides = [1, 1]} : vector<8x110xf32> to vector<8x80xf32>
    %45 = vector.extract_strided_slice %39 {offsets = [0, 12], sizes = [8, 80], strides = [1, 1]} : vector<8x110xf32> to vector<8x80xf32>
    %46 = vector.extract_strided_slice %39 {offsets = [0, 20], sizes = [8, 80], strides = [1, 1]} : vector<8x110xf32> to vector<8x80xf32>
    %47 = vector.extract_strided_slice %39 {offsets = [0, 21], sizes = [8, 80], strides = [1, 1]} : vector<8x110xf32> to vector<8x80xf32>
    %48 = vector.extract_strided_slice %39 {offsets = [0, 22], sizes = [8, 80], strides = [1, 1]} : vector<8x110xf32> to vector<8x80xf32>
    %49 = vector.shape_cast %40 : vector<8x80xf32> to vector<1x8x80xf32>
    %50 = vector.shape_cast %41 : vector<8x80xf32> to vector<1x8x80xf32>
    %51 = vector.shape_cast %42 : vector<8x80xf32> to vector<1x8x80xf32>
    %52 = vector.shape_cast %43 : vector<8x80xf32> to vector<1x8x80xf32>
    %53 = vector.shape_cast %44 : vector<8x80xf32> to vector<1x8x80xf32>
    %54 = vector.shape_cast %45 : vector<8x80xf32> to vector<1x8x80xf32>
    %55 = vector.shape_cast %46 : vector<8x80xf32> to vector<1x8x80xf32>
    %56 = vector.shape_cast %47 : vector<8x80xf32> to vector<1x8x80xf32>
    %57 = vector.shape_cast %48 : vector<8x80xf32> to vector<1x8x80xf32>
    %58 = tpu.concatenate %49, %50, %51, %52, %53, %54, %55, %56, %57 in 0 : vector<1x8x80xf32>, vector<1x8x80xf32>, vector<1x8x80xf32>, vector<1x8x80xf32>, vector<1x8x80xf32>, vector<1x8x80xf32>, vector<1x8x80xf32>, vector<1x8x80xf32>, vector<1x8x80xf32> -> vector<9x8x80xf32>
    %59 = vector.shape_cast %58 : vector<9x8x80xf32> to vector<72x80xf32>
    %c0_13 = arith.constant 0 : index
    %c0_14 = arith.constant 0 : index
    %60 = vector.load %arg4[%c0_13, %c0_14] : memref<16x72xf32, #tpu.memory_space<vmem>>, vector<16x72xf32>
    %cst_15 = arith.constant dense<0.000000e+00> : vector<16x80xf32>
    %61 = tpu.matmul %60, %59, %cst_15 {dimension_numbers = #tpu.dot_dimension_numbers<[1], [0], [0], [1], [0, 0, 1, 1], [], []>} : vector<16x72xf32>, vector<72x80xf32>, vector<16x80xf32> -> vector<16x80xf32>
    %c0_16 = arith.constant 0 : index
    %c0_17 = arith.constant 0 : index
    %62 = vector.load %arg5[%c0_16, %c0_17] : memref<16x1xf32, #tpu.memory_space<vmem>>, vector<16x1xf32>
    %63 = vector.broadcast %62 : vector<16x1xf32> to vector<16x80xf32>
    %64 = arith.addf %61, %63 : vector<16x80xf32>
    %cst_18 = arith.constant 0.000000e+00 : f32
    %65 = vector.broadcast %cst_18 : f32 to vector<16x80xf32>
    %66 = arith.maximumf %64, %65 : vector<16x80xf32>
    %c0_19 = arith.constant 0 : index
    %c0_20 = arith.constant 0 : index
    %67 = vector.load %arg12[%c0_19, %c0_20] : memref<80x342xf32, #tpu.memory_space<vmem>>, vector<80x342xf32>
    %cst_21 = arith.constant dense<0.000000e+00> : vector<16x342xf32>
    %68 = tpu.matmul %66, %67, %cst_21 {dimension_numbers = #tpu.dot_dimension_numbers<[1], [0], [0], [1], [0, 0, 1, 1], [], []>} : vector<16x80xf32>, vector<80x342xf32>, vector<16x342xf32> -> vector<16x342xf32>
    %69 = vector.extract_strided_slice %68 {offsets = [0, 0], sizes = [16, 288], strides = [1, 1]} : vector<16x342xf32> to vector<16x288xf32>
    %70 = vector.extract_strided_slice %68 {offsets = [0, 1], sizes = [16, 288], strides = [1, 1]} : vector<16x342xf32> to vector<16x288xf32>
    %71 = vector.extract_strided_slice %68 {offsets = [0, 2], sizes = [16, 288], strides = [1, 1]} : vector<16x342xf32> to vector<16x288xf32>
    %72 = vector.extract_strided_slice %68 {offsets = [0, 18], sizes = [16, 288], strides = [1, 1]} : vector<16x342xf32> to vector<16x288xf32>
    %73 = vector.extract_strided_slice %68 {offsets = [0, 19], sizes = [16, 288], strides = [1, 1]} : vector<16x342xf32> to vector<16x288xf32>
    %74 = vector.extract_strided_slice %68 {offsets = [0, 20], sizes = [16, 288], strides = [1, 1]} : vector<16x342xf32> to vector<16x288xf32>
    %75 = vector.extract_strided_slice %68 {offsets = [0, 36], sizes = [16, 288], strides = [1, 1]} : vector<16x342xf32> to vector<16x288xf32>
    %76 = vector.extract_strided_slice %68 {offsets = [0, 37], sizes = [16, 288], strides = [1, 1]} : vector<16x342xf32> to vector<16x288xf32>
    %77 = vector.extract_strided_slice %68 {offsets = [0, 38], sizes = [16, 288], strides = [1, 1]} : vector<16x342xf32> to vector<16x288xf32>
    %78 = vector.shape_cast %69 : vector<16x288xf32> to vector<1x16x288xf32>
    %79 = vector.shape_cast %70 : vector<16x288xf32> to vector<1x16x288xf32>
    %80 = vector.shape_cast %71 : vector<16x288xf32> to vector<1x16x288xf32>
    %81 = vector.shape_cast %72 : vector<16x288xf32> to vector<1x16x288xf32>
    %82 = vector.shape_cast %73 : vector<16x288xf32> to vector<1x16x288xf32>
    %83 = vector.shape_cast %74 : vector<16x288xf32> to vector<1x16x288xf32>
    %84 = vector.shape_cast %75 : vector<16x288xf32> to vector<1x16x288xf32>
    %85 = vector.shape_cast %76 : vector<16x288xf32> to vector<1x16x288xf32>
    %86 = vector.shape_cast %77 : vector<16x288xf32> to vector<1x16x288xf32>
    %87 = tpu.concatenate %78, %79, %80, %81, %82, %83, %84, %85, %86 in 0 : vector<1x16x288xf32>, vector<1x16x288xf32>, vector<1x16x288xf32>, vector<1x16x288xf32>, vector<1x16x288xf32>, vector<1x16x288xf32>, vector<1x16x288xf32>, vector<1x16x288xf32>, vector<1x16x288xf32> -> vector<9x16x288xf32>
    %88 = vector.shape_cast %87 : vector<9x16x288xf32> to vector<144x288xf32>
    %89 = vector.extract_strided_slice %30 {offsets = [0, 0], sizes = [8, 288], strides = [1, 1]} : vector<8x342xf32> to vector<8x288xf32>
    %90 = vector.extract_strided_slice %30 {offsets = [0, 1], sizes = [8, 288], strides = [1, 1]} : vector<8x342xf32> to vector<8x288xf32>
    %91 = vector.extract_strided_slice %30 {offsets = [0, 2], sizes = [8, 288], strides = [1, 1]} : vector<8x342xf32> to vector<8x288xf32>
    %92 = vector.extract_strided_slice %30 {offsets = [0, 18], sizes = [8, 288], strides = [1, 1]} : vector<8x342xf32> to vector<8x288xf32>
    %93 = vector.extract_strided_slice %30 {offsets = [0, 19], sizes = [8, 288], strides = [1, 1]} : vector<8x342xf32> to vector<8x288xf32>
    %94 = vector.extract_strided_slice %30 {offsets = [0, 20], sizes = [8, 288], strides = [1, 1]} : vector<8x342xf32> to vector<8x288xf32>
    %95 = vector.extract_strided_slice %30 {offsets = [0, 36], sizes = [8, 288], strides = [1, 1]} : vector<8x342xf32> to vector<8x288xf32>
    %96 = vector.extract_strided_slice %30 {offsets = [0, 37], sizes = [8, 288], strides = [1, 1]} : vector<8x342xf32> to vector<8x288xf32>
    %97 = vector.extract_strided_slice %30 {offsets = [0, 38], sizes = [8, 288], strides = [1, 1]} : vector<8x342xf32> to vector<8x288xf32>
    %98 = vector.shape_cast %89 : vector<8x288xf32> to vector<1x8x288xf32>
    %99 = vector.shape_cast %90 : vector<8x288xf32> to vector<1x8x288xf32>
    %100 = vector.shape_cast %91 : vector<8x288xf32> to vector<1x8x288xf32>
    %101 = vector.shape_cast %92 : vector<8x288xf32> to vector<1x8x288xf32>
    %102 = vector.shape_cast %93 : vector<8x288xf32> to vector<1x8x288xf32>
    %103 = vector.shape_cast %94 : vector<8x288xf32> to vector<1x8x288xf32>
    %104 = vector.shape_cast %95 : vector<8x288xf32> to vector<1x8x288xf32>
    %105 = vector.shape_cast %96 : vector<8x288xf32> to vector<1x8x288xf32>
    %106 = vector.shape_cast %97 : vector<8x288xf32> to vector<1x8x288xf32>
    %107 = tpu.concatenate %98, %99, %100, %101, %102, %103, %104, %105, %106 in 0 : vector<1x8x288xf32>, vector<1x8x288xf32>, vector<1x8x288xf32>, vector<1x8x288xf32>, vector<1x8x288xf32>, vector<1x8x288xf32>, vector<1x8x288xf32>, vector<1x8x288xf32>, vector<1x8x288xf32> -> vector<9x8x288xf32>
    %108 = vector.shape_cast %107 : vector<9x8x288xf32> to vector<72x288xf32>
    %109 = tpu.concatenate %88, %108 in 0 : vector<144x288xf32>, vector<72x288xf32> -> vector<216x288xf32>
    %c0_22 = arith.constant 0 : index
    %c0_23 = arith.constant 0 : index
    %110 = vector.load %arg6[%c0_22, %c0_23] : memref<8x216xf32, #tpu.memory_space<vmem>>, vector<8x216xf32>
    %cst_24 = arith.constant dense<0.000000e+00> : vector<8x288xf32>
    %111 = tpu.matmul %110, %109, %cst_24 {dimension_numbers = #tpu.dot_dimension_numbers<[1], [0], [0], [1], [0, 0, 1, 1], [], []>} : vector<8x216xf32>, vector<216x288xf32>, vector<8x288xf32> -> vector<8x288xf32>
    %c0_25 = arith.constant 0 : index
    %c0_26 = arith.constant 0 : index
    %112 = vector.load %arg7[%c0_25, %c0_26] : memref<8x1xf32, #tpu.memory_space<vmem>>, vector<8x1xf32>
    %113 = vector.broadcast %112 : vector<8x1xf32> to vector<8x288xf32>
    %114 = arith.addf %111, %113 : vector<8x288xf32>
    %cst_27 = arith.constant 0.000000e+00 : f32
    %115 = vector.broadcast %cst_27 : f32 to vector<8x288xf32>
    %116 = arith.maximumf %114, %115 : vector<8x288xf32>
    %c0_28 = arith.constant 0 : index
    %c0_29 = arith.constant 0 : index
    %117 = vector.load %arg8[%c0_28, %c0_29] : memref<1x8xf32, #tpu.memory_space<vmem>>, vector<1x8xf32>
    %cst_30 = arith.constant dense<0.000000e+00> : vector<1x288xf32>
    %118 = tpu.matmul %117, %116, %cst_30 {dimension_numbers = #tpu.dot_dimension_numbers<[1], [0], [0], [1], [0, 0, 1, 1], [], []>} : vector<1x8xf32>, vector<8x288xf32>, vector<1x288xf32> -> vector<1x288xf32>
    %c0_31 = arith.constant 0 : index
    %c0_32 = arith.constant 0 : index
    %119 = vector.load %arg13[%c0_31, %c0_32] : memref<288x256xf32, #tpu.memory_space<vmem>>, vector<288x256xf32>
    %cst_33 = arith.constant dense<0.000000e+00> : vector<1x256xf32>
    %120 = tpu.matmul %118, %119, %cst_33 {dimension_numbers = #tpu.dot_dimension_numbers<[1], [0], [0], [1], [0, 0, 1, 1], [], []>} : vector<1x288xf32>, vector<288x256xf32>, vector<1x256xf32> -> vector<1x256xf32>
    %c0_34 = arith.constant 0 : index
    %c0_35 = arith.constant 0 : index
    %121 = vector.load %arg9[%c0_34, %c0_35] : memref<1x1xf32, #tpu.memory_space<vmem>>, vector<1x1xf32>
    %122 = vector.broadcast %121 : vector<1x1xf32> to vector<1x256xf32>
    %123 = arith.addf %120, %122 : vector<1x256xf32>
    %c0_36 = arith.constant 0 : index
    %c0_37 = arith.constant 0 : index
    %c0_38 = arith.constant 0 : index
    %124 = vector.load %arg14[%c0_36, %c0_37, %c0_38] : memref<1x1x256xf32, #tpu.memory_space<vmem>>, vector<1x1x256xf32>
    %125 = vector.shape_cast %124 : vector<1x1x256xf32> to vector<1x256xf32>
    %126 = vector.shape_cast %123 : vector<1x256xf32> to vector<1x1x256xf32>
    tpu.vector_store %arg14[%c0_36, %c0_37, %c0_38], %126 {strides = array<i32>} : memref<1x1x256xf32, #tpu.memory_space<vmem>>, vector<1x1x256xf32>,
    return
  }
  func.func @transform_0(%arg0: i32) -> (i32, i32, i32) {
    %c0_i32 = arith.constant 0 : i32
    %c0_i32_0 = arith.constant 0 : i32
    %c0_i32_1 = arith.constant 0 : i32
    return %arg0, %c0_i32, %c0_i32_0 : i32, i32, i32
  }
  func.func @transform_1(%arg0: i32) -> (i32, i32) {
    %c0_i32 = arith.constant 0 : i32
    %c0_i32_0 = arith.constant 0 : i32
    %c0_i32_1 = arith.constant 0 : i32
    return %c0_i32, %c0_i32_0 : i32, i32
  }
  func.func @transform_2(%arg0: i32) -> (i32, i32) {
    %c0_i32 = arith.constant 0 : i32
    %c0_i32_0 = arith.constant 0 : i32
    %c0_i32_1 = arith.constant 0 : i32
    return %c0_i32, %c0_i32_0 : i32, i32
  }
  func.func @transform_3(%arg0: i32) -> (i32, i32) {
    %c0_i32 = arith.constant 0 : i32
    %c0_i32_0 = arith.constant 0 : i32
    %c0_i32_1 = arith.constant 0 : i32
    return %c0_i32, %c0_i32_0 : i32, i32
  }
  func.func @transform_4(%arg0: i32) -> (i32, i32) {
    %c0_i32 = arith.constant 0 : i32
    %c0_i32_0 = arith.constant 0 : i32
    %c0_i32_1 = arith.constant 0 : i32
    return %c0_i32, %c0_i32_0 : i32, i32
  }
  func.func @transform_5(%arg0: i32) -> (i32, i32) {
    %c0_i32 = arith.constant 0 : i32
    %c0_i32_0 = arith.constant 0 : i32
    %c0_i32_1 = arith.constant 0 : i32
    return %c0_i32, %c0_i32_0 : i32, i32
  }
  func.func @transform_6(%arg0: i32) -> (i32, i32) {
    %c0_i32 = arith.constant 0 : i32
    %c0_i32_0 = arith.constant 0 : i32
    %c0_i32_1 = arith.constant 0 : i32
    return %c0_i32, %c0_i32_0 : i32, i32
  }
  func.func @transform_7(%arg0: i32) -> (i32, i32) {
    %c0_i32 = arith.constant 0 : i32
    %c0_i32_0 = arith.constant 0 : i32
    %c0_i32_1 = arith.constant 0 : i32
    return %c0_i32, %c0_i32_0 : i32, i32
  }
  func.func @transform_8(%arg0: i32) -> (i32, i32) {
    %c0_i32 = arith.constant 0 : i32
    %c0_i32_0 = arith.constant 0 : i32
    %c0_i32_1 = arith.constant 0 : i32
    return %c0_i32, %c0_i32_0 : i32, i32
  }
  func.func @transform_9(%arg0: i32) -> (i32, i32) {
    %c0_i32 = arith.constant 0 : i32
    %c0_i32_0 = arith.constant 0 : i32
    %c0_i32_1 = arith.constant 0 : i32
    return %c0_i32, %c0_i32_0 : i32, i32
  }
  func.func @transform_10(%arg0: i32) -> (i32, i32) {
    %c0_i32 = arith.constant 0 : i32
    %c0_i32_0 = arith.constant 0 : i32
    %c0_i32_1 = arith.constant 0 : i32
    return %c0_i32, %c0_i32_0 : i32, i32
  }
  func.func @transform_11(%arg0: i32) -> (i32, i32) {
    %c0_i32 = arith.constant 0 : i32
    %c0_i32_0 = arith.constant 0 : i32
    %c0_i32_1 = arith.constant 0 : i32
    return %c0_i32, %c0_i32_0 : i32, i32
  }
  func.func @transform_12(%arg0: i32) -> (i32, i32) {
    %c0_i32 = arith.constant 0 : i32
    %c0_i32_0 = arith.constant 0 : i32
    %c0_i32_1 = arith.constant 0 : i32
    return %c0_i32, %c0_i32_0 : i32, i32
  }
  func.func @transform_13(%arg0: i32) -> (i32, i32, i32) {
    %c0_i32 = arith.constant 0 : i32
    %c0_i32_0 = arith.constant 0 : i32
    %c0_i32_1 = arith.constant 0 : i32
    return %arg0, %c0_i32, %c0_i32_0 : i32, i32, i32
  }
}

</mosaic_0001>

<llo_original>
// kernel: seg_model_forward.1
$region0: #{seg_model_forward.1}
  #allocation0 [shape = 'u32[]', space=smem, size = 0x4, offset = 0x4, fixed_abs, tag = 'smem constant byte address 0x4 - core index']
  #allocation1 [shape = 'u32[72,128]{1,0:T(1,128)}', space=vmem, size = 0x9000, scoped, tag = 'internal scratch']
  #allocation2 [shape = 'f32[1,1]{1,0:T(1,128)S(1)}', space=vmem, size = 0x200, scoped, tag = 'scoped memory for seg_model_forward.1']
  %s0 = inlined_call_operand.vmem [shape: f32[2,8,342], index: 0, kind: input, shape index: {}]
  %s1 = inlined_call_operand.vmem [shape: f32[8,72], index: 1, kind: input, shape index: {}]
  %s2 = inlined_call_operand.vmem [shape: f32[8,1], index: 2, kind: input, shape index: {}]
  %s3 = inlined_call_operand.vmem [shape: f32[16,72], index: 3, kind: input, shape index: {}]
  %s4 = inlined_call_operand.vmem [shape: f32[16,1], index: 4, kind: input, shape index: {}]
  %s5 = inlined_call_operand.vmem [shape: f32[8,216], index: 5, kind: input, shape index: {}]
  %s6 = inlined_call_operand.vmem [shape: f32[8,1], index: 6, kind: input, shape index: {}]
  %s7 = inlined_call_operand.vmem [shape: f32[1,8], index: 7, kind: input, shape index: {}]
  %s8 = inlined_call_operand.<no memory space> [shape: f32[1,1], index: 8, kind: input, shape index: {}]
  %s9 = inlined_call_operand.vmem [shape: f32[288,342], index: 9, kind: input, shape index: {}]
  %s10 = inlined_call_operand.vmem [shape: f32[288,110], index: 10, kind: input, shape index: {}]
  %s11 = inlined_call_operand.vmem [shape: f32[80,342], index: 11, kind: input, shape index: {}]
  %s12 = inlined_call_operand.vmem [shape: f32[288,256], index: 12, kind: input, shape index: {}]
  %s13 = inlined_call_operand.vmem [shape: f32[2,1,256], index: 13, kind: output, shape index: {}]
  %s14 = sld [smem:[#allocation0]]
  $region85: #{seg_model_forward.1} parent=0
    _
  %s16 = ssub.s32 1, %s14
  %s17 = scalar_select 0, %s16, %s14
  %v18 = vstv %s8
  %19 = vst [vmem:[#allocation2] sm:$0x1] %v18
  loop: start=0, step=1, limit=4
  $region2: #{seg_model_forward.1} parent=0 // loop_pre_header
    _
  $region3: #{seg_model_forward.1} parent=0 // loop_header
    %s21 = sphi 0, %s25
    %p22 = scmp.ge.s32.totalorder %s21, 4
    %s31 = sphi 0, %s33
    %s34 = sphi 0, %s31
    %s35 = sphi 0, %s34
    %s51 = sphi 0, %s35
    %s55 = sphi 0, %s55
    %s57 = sphi 0, %s55
    %s58 = sphi 0, %s57
    %s72 = sphi 0, %s58
    %s76 = sphi 0, %s76
    %s78 = sphi 0, %s76
    %s79 = sphi 0, %s78
    %s93 = sphi 0, %s79
    %s97 = sphi 0, %s97
    %s99 = sphi 0, %s97
    %s100 = sphi 0, %s99
    %s114 = sphi 0, %s100
    %s118 = sphi 0, %s118
    %s120 = sphi 0, %s118
    %s121 = sphi 0, %s120
    %s135 = sphi 0, %s121
    %s139 = sphi 0, %s139
    %s141 = sphi 0, %s139
    %s142 = sphi 0, %s141
    %s156 = sphi 0, %s142
    %s160 = sphi 0, %s160
    %s162 = sphi 0, %s160
    %s163 = sphi 0, %s162
    %s177 = sphi 0, %s163
    %s181 = sphi 0, %s181
    %s183 = sphi 0, %s181
    %s184 = sphi 0, %s183
    %s198 = sphi 0, %s184
    %s202 = sphi 0, %s202
    %s204 = sphi 0, %s202
    %s205 = sphi 0, %s204
    %s219 = sphi 0, %s205
    %s223 = sphi 0, %s223
    %s225 = sphi 0, %s223
    %s226 = sphi 0, %s225
    %s240 = sphi 0, %s226
    %s244 = sphi 0, %s244
    %s246 = sphi 0, %s244
    %s247 = sphi 0, %s246
    %s261 = sphi 0, %s247
    %s265 = sphi 0, %s265
    %s267 = sphi 0, %s265
    %s268 = sphi 0, %s267
    %s282 = sphi 0, %s268
    %s286 = sphi 0, %s286
    %s288 = sphi 0, %s286
    %s289 = sphi 0, %s288
    %s303 = sphi 0, %s289
    %s309 = sphi 0, %s311
    %s312 = sphi 0, %s309
    %s313 = sphi 0, %s312
    %s329 = sphi 0, %s313
  $region4: #{seg_model_forward.1} parent=0 // loop_header_branch
    %24 = sbr.rel (%p22) target = $region8
  $region5: #{seg_model_forward.1} parent=0 // loop_body
    %s26 = ssub.s32 %s21, 1
    %s27 = ssub.s32 %s21, 2
    %s28 = sadd.s32 %s21, 1
    %s29 = ssub.s32 %s21, %s28
    %p30 = scmp.eq.s32.totalorder %s29, 0
    %s32 = sadd.s32 %s31, 1
    %s33 = scalar_select %p30, %s31, %s32
    %p36 = pneg %p30
    %p37 = scmp.eq.s32.totalorder %s21, 1
    %p38 = por %p36, %p37
    %p39 = scmp.ne.s32.totalorder %s31, %s34
    %p40 = scmp.eq.s32.totalorder %s21, 0
    %p41 = por %p39, %p40
    %p42 = scmp.ne.s32.totalorder %s31, %s34
    %p43 = scmp.eq.s32.totalorder %s26, 1
    %p44 = por %p42, %p43
    %p45 = scmp.ne.s32.totalorder %s34, %s35
    %p46 = scmp.eq.s32.totalorder %s26, 0
    %p47 = por %p45, %p46
    %p48 = scmp.ne.s32.totalorder %s34, %s35
    %p49 = scmp.eq.s32.totalorder %s27, 1
    %p50 = por %p48, %p49
    %p52 = scmp.ne.s32.totalorder %s35, %s51
    %p53 = scmp.eq.s32.totalorder %s27, 0
    %p54 = por %p52, %p53
    %s56 = sadd.s32 %s55, 1
    %p59 = scmp.eq.s32.totalorder %s21, 1
    %p60 = scmp.ne.s32.totalorder %s55, %s57
    %p61 = scmp.eq.s32.totalorder %s21, 0
    %p62 = por %p60, %p61
    %p63 = scmp.ne.s32.totalorder %s55, %s57
    %p64 = scmp.eq.s32.totalorder %s26, 1
    %p65 = por %p63, %p64
    %p66 = scmp.ne.s32.totalorder %s57, %s58
    %p67 = scmp.eq.s32.totalorder %s26, 0
    %p68 = por %p66, %p67
    %p69 = scmp.ne.s32.totalorder %s57, %s58
    %p70 = scmp.eq.s32.totalorder %s27, 1
    %p71 = por %p69, %p70
    %p73 = scmp.ne.s32.totalorder %s58, %s72
    %p74 = scmp.eq.s32.totalorder %s27, 0
    %p75 = por %p73, %p74
    %s77 = sadd.s32 %s76, 1
    %p80 = scmp.eq.s32.totalorder %s21, 1
    %p81 = scmp.ne.s32.totalorder %s76, %s78
    %p82 = scmp.eq.s32.totalorder %s21, 0
    %p83 = por %p81, %p82
    %p84 = scmp.ne.s32.totalorder %s76, %s78
    %p85 = scmp.eq.s32.totalorder %s26, 1
    %p86 = por %p84, %p85
    %p87 = scmp.ne.s32.totalorder %s78, %s79
    %p88 = scmp.eq.s32.totalorder %s26, 0
    %p89 = por %p87, %p88
    %p90 = scmp.ne.s32.totalorder %s78, %s79
    %p91 = scmp.eq.s32.totalorder %s27, 1
    %p92 = por %p90, %p91
    %p94 = scmp.ne.s32.totalorder %s79, %s93
    %p95 = scmp.eq.s32.totalorder %s27, 0
    %p96 = por %p94, %p95
    %s98 = sadd.s32 %s97, 1
    %p101 = scmp.eq.s32.totalorder %s21, 1
    %p102 = scmp.ne.s32.totalorder %s97, %s99
    %p103 = scmp.eq.s32.totalorder %s21, 0
    %p104 = por %p102, %p103
    %p105 = scmp.ne.s32.totalorder %s97, %s99
    %p106 = scmp.eq.s32.totalorder %s26, 1
    %p107 = por %p105, %p106
    %p108 = scmp.ne.s32.totalorder %s99, %s100
    %p109 = scmp.eq.s32.totalorder %s26, 0
    %p110 = por %p108, %p109
    %p111 = scmp.ne.s32.totalorder %s99, %s100
    %p112 = scmp.eq.s32.totalorder %s27, 1
    %p113 = por %p111, %p112
    %p115 = scmp.ne.s32.totalorder %s100, %s114
    %p116 = scmp.eq.s32.totalorder %s27, 0
    %p117 = por %p115, %p116
    %s119 = sadd.s32 %s118, 1
    %p122 = scmp.eq.s32.totalorder %s21, 1
    %p123 = scmp.ne.s32.totalorder %s118, %s120
    %p124 = scmp.eq.s32.totalorder %s21, 0
    %p125 = por %p123, %p124
    %p126 = scmp.ne.s32.totalorder %s118, %s120
    %p127 = scmp.eq.s32.totalorder %s26, 1
    %p128 = por %p126, %p127
    %p129 = scmp.ne.s32.totalorder %s120, %s121
    %p130 = scmp.eq.s32.totalorder %s26, 0
    %p131 = por %p129, %p130
    %p132 = scmp.ne.s32.totalorder %s120, %s121
    %p133 = scmp.eq.s32.totalorder %s27, 1
    %p134 = por %p132, %p133
    %p136 = scmp.ne.s32.totalorder %s121, %s135
    %p137 = scmp.eq.s32.totalorder %s27, 0
    %p138 = por %p136, %p137
    %s140 = sadd.s32 %s139, 1
    %p143 = scmp.eq.s32.totalorder %s21, 1
    %p144 = scmp.ne.s32.totalorder %s139, %s141
    %p145 = scmp.eq.s32.totalorder %s21, 0
    %p146 = por %p144, %p145
    %p147 = scmp.ne.s32.totalorder %s139, %s141
    %p148 = scmp.eq.s32.totalorder %s26, 1
    %p149 = por %p147, %p148
    %p150 = scmp.ne.s32.totalorder %s141, %s142
    %p151 = scmp.eq.s32.totalorder %s26, 0
    %p152 = por %p150, %p151
    %p153 = scmp.ne.s32.totalorder %s141, %s142
    %p154 = scmp.eq.s32.totalorder %s27, 1
    %p155 = por %p153, %p154
    %p157 = scmp.ne.s32.totalorder %s142, %s156
    %p158 = scmp.eq.s32.totalorder %s27, 0
    %p159 = por %p157, %p158
    %s161 = sadd.s32 %s160, 1
    %p164 = scmp.eq.s32.totalorder %s21, 1
    %p165 = scmp.ne.s32.totalorder %s160, %s162
    %p166 = scmp.eq.s32.totalorder %s21, 0
    %p167 = por %p165, %p166
    %p168 = scmp.ne.s32.totalorder %s160, %s162
    %p169 = scmp.eq.s32.totalorder %s26, 1
    %p170 = por %p168, %p169
    %p171 = scmp.ne.s32.totalorder %s162, %s163
    %p172 = scmp.eq.s32.totalorder %s26, 0
    %p173 = por %p171, %p172
    %p174 = scmp.ne.s32.totalorder %s162, %s163
    %p175 = scmp.eq.s32.totalorder %s27, 1
    %p176 = por %p174, %p175
    %p178 = scmp.ne.s32.totalorder %s163, %s177
    %p179 = scmp.eq.s32.totalorder %s27, 0
    %p180 = por %p178, %p179
    %s182 = sadd.s32 %s181, 1
    %p185 = scmp.eq.s32.totalorder %s21, 1
    %p186 = scmp.ne.s32.totalorder %s181, %s183
    %p187 = scmp.eq.s32.totalorder %s21, 0
    %p188 = por %p186, %p187
    %p189 = scmp.ne.s32.totalorder %s181, %s183
    %p190 = scmp.eq.s32.totalorder %s26, 1
    %p191 = por %p189, %p190
    %p192 = scmp.ne.s32.totalorder %s183, %s184
    %p193 = scmp.eq.s32.totalorder %s26, 0
    %p194 = por %p192, %p193
    %p195 = scmp.ne.s32.totalorder %s183, %s184
    %p196 = scmp.eq.s32.totalorder %s27, 1
    %p197 = por %p195, %p196
    %p199 = scmp.ne.s32.totalorder %s184, %s198
    %p200 = scmp.eq.s32.totalorder %s27, 0
    %p201 = por %p199, %p200
    %s203 = sadd.s32 %s202, 1
    %p206 = scmp.eq.s32.totalorder %s21, 1
    %p207 = scmp.ne.s32.totalorder %s202, %s204
    %p208 = scmp.eq.s32.totalorder %s21, 0
    %p209 = por %p207, %p208
    %p210 = scmp.ne.s32.totalorder %s202, %s204
    %p211 = scmp.eq.s32.totalorder %s26, 1
    %p212 = por %p210, %p211
    %p213 = scmp.ne.s32.totalorder %s204, %s205
    %p214 = scmp.eq.s32.totalorder %s26, 0
    %p215 = por %p213, %p214
    %p216 = scmp.ne.s32.totalorder %s204, %s205
    %p217 = scmp.eq.s32.totalorder %s27, 1
    %p218 = por %p216, %p217
    %p220 = scmp.ne.s32.totalorder %s205, %s219
    %p221 = scmp.eq.s32.totalorder %s27, 0
    %p222 = por %p220, %p221
    %s224 = sadd.s32 %s223, 1
    %p227 = scmp.eq.s32.totalorder %s21, 1
    %p228 = scmp.ne.s32.totalorder %s223, %s225
    %p229 = scmp.eq.s32.totalorder %s21, 0
    %p230 = por %p228, %p229
    %p231 = scmp.ne.s32.totalorder %s223, %s225
    %p232 = scmp.eq.s32.totalorder %s26, 1
    %p233 = por %p231, %p232
    %p234 = scmp.ne.s32.totalorder %s225, %s226
    %p235 = scmp.eq.s32.totalorder %s26, 0
    %p236 = por %p234, %p235
    %p237 = scmp.ne.s32.totalorder %s225, %s226
    %p238 = scmp.eq.s32.totalorder %s27, 1
    %p239 = por %p237, %p238
    %p241 = scmp.ne.s32.totalorder %s226, %s240
    %p242 = scmp.eq.s32.totalorder %s27, 0
    %p243 = por %p241, %p242
    %s245 = sadd.s32 %s244, 1
    %p248 = scmp.eq.s32.totalorder %s21, 1
    %p249 = scmp.ne.s32.totalorder %s244, %s246
    %p250 = scmp.eq.s32.totalorder %s21, 0
    %p251 = por %p249, %p250
    %p252 = scmp.ne.s32.totalorder %s244, %s246
    %p253 = scmp.eq.s32.totalorder %s26, 1
    %p254 = por %p252, %p253
    %p255 = scmp.ne.s32.totalorder %s246, %s247
    %p256 = scmp.eq.s32.totalorder %s26, 0
    %p257 = por %p255, %p256
    %p258 = scmp.ne.s32.totalorder %s246, %s247
    %p259 = scmp.eq.s32.totalorder %s27, 1
    %p260 = por %p258, %p259
    %p262 = scmp.ne.s32.totalorder %s247, %s261
    %p263 = scmp.eq.s32.totalorder %s27, 0
    %p264 = por %p262, %p263
    %s266 = sadd.s32 %s265, 1
    %p269 = scmp.eq.s32.totalorder %s21, 1
    %p270 = scmp.ne.s32.totalorder %s265, %s267
    %p271 = scmp.eq.s32.totalorder %s21, 0
    %p272 = por %p270, %p271
    %p273 = scmp.ne.s32.totalorder %s265, %s267
    %p274 = scmp.eq.s32.totalorder %s26, 1
    %p275 = por %p273, %p274
    %p276 = scmp.ne.s32.totalorder %s267, %s268
    %p277 = scmp.eq.s32.totalorder %s26, 0
    %p278 = por %p276, %p277
    %p279 = scmp.ne.s32.totalorder %s267, %s268
    %p280 = scmp.eq.s32.totalorder %s27, 1
    %p281 = por %p279, %p280
    %p283 = scmp.ne.s32.totalorder %s268, %s282
    %p284 = scmp.eq.s32.totalorder %s27, 0
    %p285 = por %p283, %p284
    %s287 = sadd.s32 %s286, 1
    %p290 = scmp.eq.s32.totalorder %s21, 1
    %p291 = scmp.ne.s32.totalorder %s286, %s288
    %p292 = scmp.eq.s32.totalorder %s21, 0
    %p293 = por %p291, %p292
    %p294 = scmp.ne.s32.totalorder %s286, %s288
    %p295 = scmp.eq.s32.totalorder %s26, 1
    %p296 = por %p294, %p295
    %p297 = scmp.ne.s32.totalorder %s288, %s289
    %p298 = scmp.eq.s32.totalorder %s26, 0
    %p299 = por %p297, %p298
    %p300 = scmp.ne.s32.totalorder %s288, %s289
    %p301 = scmp.eq.s32.totalorder %s27, 1
    %p302 = por %p300, %p301
    %p304 = scmp.ne.s32.totalorder %s289, %s303
    %p305 = scmp.eq.s32.totalorder %s27, 0
    %p306 = por %p304, %p305
    %s307 = ssub.s32 %s21, %s28
    %p308 = scmp.eq.s32.totalorder %s307, 0
    %s310 = sadd.s32 %s309, 1
    %s311 = scalar_select %p308, %s309, %s310
    %p314 = pneg %p308
    %p315 = scmp.eq.s32.totalorder %s21, 1
    %p316 = por %p314, %p315
    %p317 = scmp.ne.s32.totalorder %s309, %s312
    %p318 = scmp.eq.s32.totalorder %s21, 0
    %p319 = por %p317, %p318
    %p320 = scmp.ne.s32.totalorder %s309, %s312
    %p321 = scmp.eq.s32.totalorder %s26, 1
    %p322 = por %p320, %p321
    %p323 = scmp.ne.s32.totalorder %s312, %s313
    %p324 = scmp.eq.s32.totalorder %s26, 0
    %p325 = por %p323, %p324
    %p326 = scmp.ne.s32.totalorder %s312, %s313
    %p327 = scmp.eq.s32.totalorder %s27, 1
    %p328 = por %p326, %p327
    %p330 = scmp.ne.s32.totalorder %s313, %s329
    %p331 = scmp.eq.s32.totalorder %s27, 0
    %p332 = por %p330, %p331
    %p333 = scmp.le.s32.totalorder 1, %s21
    %p334 = scmp.lt.s32.totalorder %s21, 3
    %p335 = pnand %p333, %p334
    %p336 = pneg %p335
    // Predicated region
    $region9: #{seg_model_forward.1} parent=5 // pred_check
      _
    $region10: #{seg_model_forward.1} parent=5 // pred_check_branch
      %338 = sbr.rel (%p335) target = $region12
    $region11: #{seg_model_forward.1} parent=5 // pred_region
      %s339 = ssub.s32 %s21, 1
      // Predicated region
      $region13: #{seg_model_forward.1} parent=11 // pred_check
        %p340 = pneg %p68
      $region14: #{seg_model_forward.1} parent=11 // pred_check_branch
        %342 = sbr.rel (%p340) target = $region16
      $region15: #{seg_model_forward.1} parent=11 // pred_region
        _
      $region16: #{seg_model_forward.1} parent=11 // pred_fallthru
        _
      // Predicated region
      $region17: #{seg_model_forward.1} parent=11 // pred_check
        %p343 = pneg %p89
      $region18: #{seg_model_forward.1} parent=11 // pred_check_branch
        %345 = sbr.rel (%p343) target = $region20
      $region19: #{seg_model_forward.1} parent=11 // pred_region
        _
      $region20: #{seg_model_forward.1} parent=11 // pred_fallthru
        _
      // Predicated region
      $region21: #{seg_model_forward.1} parent=11 // pred_check
        %p346 = pneg %p110
      $region22: #{seg_model_forward.1} parent=11 // pred_check_branch
        %348 = sbr.rel (%p346) target = $region24
      $region23: #{seg_model_forward.1} parent=11 // pred_region
        _
      $region24: #{seg_model_forward.1} parent=11 // pred_fallthru
        _
      // Predicated region
      $region25: #{seg_model_forward.1} parent=11 // pred_check
        %p349 = pneg %p131
      $region26: #{seg_model_forward.1} parent=11 // pred_check_branch
        %351 = sbr.rel (%p349) target = $region28
      $region27: #{seg_model_forward.1} parent=11 // pred_region
        _
      $region28: #{seg_model_forward.1} parent=11 // pred_fallthru
        _
      // Predicated region
      $region29: #{seg_model_forward.1} parent=11 // pred_check
        %p352 = pneg %p152
      $region30: #{seg_model_forward.1} parent=11 // pred_check_branch
        %354 = sbr.rel (%p352) target = $region32
      $region31: #{seg_model_forward.1} parent=11 // pred_region
        _
      $region32: #{seg_model_forward.1} parent=11 // pred_fallthru
        _
      // Predicated region
      $region33: #{seg_model_forward.1} parent=11 // pred_check
        %p355 = pneg %p173
      $region34: #{seg_model_forward.1} parent=11 // pred_check_branch
        %357 = sbr.rel (%p355) target = $region36
      $region35: #{seg_model_forward.1} parent=11 // pred_region
        _
      $region36: #{seg_model_forward.1} parent=11 // pred_fallthru
        _
      // Predicated region
      $region37: #{seg_model_forward.1} parent=11 // pred_check
        %p358 = pneg %p194
      $region38: #{seg_model_forward.1} parent=11 // pred_check_branch
        %360 = sbr.rel (%p358) target = $region40
      $region39: #{seg_model_forward.1} parent=11 // pred_region
        _
      $region40: #{seg_model_forward.1} parent=11 // pred_fallthru
        _
      // Predicated region
      $region41: #{seg_model_forward.1} parent=11 // pred_check
        %p361 = pneg %p215
      $region42: #{seg_model_forward.1} parent=11 // pred_check_branch
        %363 = sbr.rel (%p361) target = $region44
      $region43: #{seg_model_forward.1} parent=11 // pred_region
        _
      $region44: #{seg_model_forward.1} parent=11 // pred_fallthru
        _
      // Predicated region
      $region45: #{seg_model_forward.1} parent=11 // pred_check
        %p364 = pneg %p236
      $region46: #{seg_model_forward.1} parent=11 // pred_check_branch
        %366 = sbr.rel (%p364) target = $region48
      $region47: #{seg_model_forward.1} parent=11 // pred_region
        _
      $region48: #{seg_model_forward.1} parent=11 // pred_fallthru
        _
      // Predicated region
      $region49: #{seg_model_forward.1} parent=11 // pred_check
        %p367 = pneg %p257
      $region50: #{seg_model_forward.1} parent=11 // pred_check_branch
        %369 = sbr.rel (%p367) target = $region52
      $region51: #{seg_model_forward.1} parent=11 // pred_region
        _
      $region52: #{seg_model_forward.1} parent=11 // pred_fallthru
        _
      // Predicated region
      $region53: #{seg_model_forward.1} parent=11 // pred_check
        %p370 = pneg %p278
      $region54: #{seg_model_forward.1} parent=11 // pred_check_branch
        %372 = sbr.rel (%p370) target = $region56
      $region55: #{seg_model_forward.1} parent=11 // pred_region
        _
      $region56: #{seg_model_forward.1} parent=11 // pred_fallthru
        _
      // Predicated region
      $region57: #{seg_model_forward.1} parent=11 // pred_check
        %p373 = pneg %p299
      $region58: #{seg_model_forward.1} parent=11 // pred_check_branch
        %375 = sbr.rel (%p373) target = $region60
      $region59: #{seg_model_forward.1} parent=11 // pred_region
        _
      $region60: #{seg_model_forward.1} parent=11 // pred_fallthru
        _
    $region12: #{seg_model_forward.1} parent=5 // pred_fallthru
      _
    %p376 = scmp.lt.s32.totalorder %s21, 2
    // Predicated region
    $region61: #{seg_model_forward.1} parent=5 // pred_check
      %p377 = pneg %p376
    $region62: #{seg_model_forward.1} parent=5 // pred_check_branch
      %379 = sbr.rel (%p377) target = $region64
    $region63: #{seg_model_forward.1} parent=5 // pred_region
      // Predicated region
      $region65: #{seg_model_forward.1} parent=63 // pred_check
        %p380 = pneg %p41
      $region66: #{seg_model_forward.1} parent=63 // pred_check_branch
        %382 = sbr.rel (%p380) target = $region68
      $region67: #{seg_model_forward.1} parent=63 // pred_region
        %p383 = scmp.lt.s32.totalorder %s21, 1
        %s384 = scalar_select %p383, %s21, 1
        %s385 = smul.addr %s384, 3
        %s386 = smul.addr %s385, 8
        %s387 = scalar_lea.vmem %s0, %s386
      $region68: #{seg_model_forward.1} parent=63 // pred_fallthru
        _
    $region64: #{seg_model_forward.1} parent=5 // pred_fallthru
      _
    %p388 = scmp.le.s32.totalorder 1, %s21
    %p389 = scmp.lt.s32.totalorder %s21, 3
    %p390 = pnand %p388, %p389
    %p391 = pneg %p390
    // Predicated region
    $region69: #{seg_model_forward.1} parent=5 // pred_check
      _
    $region70: #{seg_model_forward.1} parent=5 // pred_check_branch
      %393 = sbr.rel (%p390) target = $region72
    $region71: #{seg_model_forward.1} parent=5 // pred_region
      %s394 = ssub.s32 %s21, 1
      %p395 = scmp.lt.s32.totalorder %s26, 1
      %s396 = scalar_select %p395, %s26, 1
      %s397 = smul.addr %s396, 3
      %s398 = smul.addr %s397, 8
      %s399 = scalar_lea.vmem %s0, %s398
      %p400 = pneg %p47
      %p401 = pneg %p44
      %p402 = pneg %p68
      %p403 = pneg %p65
      %p404 = pneg %p89
      %p405 = pneg %p86
      %p406 = pneg %p110
      %p407 = pneg %p107
      %p408 = pneg %p131
      %p409 = pneg %p128
      %p410 = pneg %p152
      %p411 = pneg %p149
      %p412 = pneg %p173
      %p413 = pneg %p170
      %p414 = pneg %p194
      %p415 = pneg %p191
      %p416 = pneg %p215
      %p417 = pneg %p212
      %p418 = pneg %p236
      %p419 = pneg %p233
      %p420 = pneg %p257
      %p421 = pneg %p254
      %p422 = pneg %p278
      %p423 = pneg %p275
      %p424 = pneg %p299
      %p425 = pneg %p296
      %p426 = pneg %p325
      %p427 = pneg %p322
      %p428 = scmp.lt.s32.totalorder %s26, 1
      %s429 = scalar_select %p428, %s26, 1
      %s430 = smul.addr %s429, 2
      %s431 = scalar_lea.vmem %s13, %s430
      %p432 = scmp.lt.s32.totalorder %s26, 1
      %s433 = scalar_select %p432, %s26, 1
      %s434 = smul.addr %s433, 3
      %s435 = smul.addr %s434, 8
      %s436 = scalar_lea.vmem %s0, %s435
      %p437 = scmp.lt.s32.totalorder %s26, 1
      %s438 = scalar_select %p437, %s26, 1
      %s439 = smul.addr %s438, 2
      %s440 = scalar_lea.vmem %s13, %s439
      %v441 = vld [vmem:[%s436] sm:$0xff]
      %v442 = vld [vmem:[%s436 + $0x8] sm:$0xff]
      %v443 = vld [vmem:[%s436 + $0x10] sm:$0xff]
      %447 = vrot.lane.b32.xlu0 %v441, 127
      %v448 = vpop.permute.xlu0 %447
      %449 = vrot.lane.b32.xlu0 %v442, 127
      %v450 = vpop.permute.xlu0 %449
      %451 = vrot.lane.b32.xlu0 %v443, 127
      %v452 = vpop.permute.xlu0 %451
      %vm453 = vcmask 1039360
      %v454 = vsel %vm453, %v448, %v450
      %v455 = vsel %vm453, %v450, %v452
      %459 = vrot.lane.b32.xlu0 %v441, 126
      %v460 = vpop.permute.xlu0 %459
      %461 = vrot.lane.b32.xlu0 %v442, 126
      %v462 = vpop.permute.xlu0 %461
      %463 = vrot.lane.b32.xlu0 %v443, 126
      %v464 = vpop.permute.xlu0 %463
      %vm465 = vcmask 1031168
      %v466 = vsel %vm465, %v460, %v462
      %v467 = vsel %vm465, %v462, %v464
      %471 = vrot.lane.b32.xlu0 %v441, 110
      %v472 = vpop.permute.xlu0 %471
      %473 = vrot.lane.b32.xlu0 %v442, 110
      %v474 = vpop.permute.xlu0 %473
      %475 = vrot.lane.b32.xlu0 %v443, 110
      %v476 = vpop.permute.xlu0 %475
      %vm477 = vcmask 900096
      %v478 = vsel %vm477, %v472, %v474
      %v479 = vsel %vm477, %v474, %v476
      %483 = vrot.lane.b32.xlu0 %v441, 109
      %v484 = vpop.permute.xlu0 %483
      %485 = vrot.lane.b32.xlu0 %v442, 109
      %v486 = vpop.permute.xlu0 %485
      %487 = vrot.lane.b32.xlu0 %v443, 109
      %v488 = vpop.permute.xlu0 %487
      %vm489 = vcmask 891904
      %v490 = vsel %vm489, %v484, %v486
      %v491 = vsel %vm489, %v486, %v488
      %495 = vrot.lane.b32.xlu0 %v441, 108
      %v496 = vpop.permute.xlu0 %495
      %497 = vrot.lane.b32.xlu0 %v442, 108
      %v498 = vpop.permute.xlu0 %497
      %499 = vrot.lane.b32.xlu0 %v443, 108
      %v500 = vpop.permute.xlu0 %499
      %vm501 = vcmask 883712
      %v502 = vsel %vm501, %v496, %v498
      %v503 = vsel %vm501, %v498, %v500
      %507 = vrot.lane.b32.xlu0 %v441, 92
      %v508 = vpop.permute.xlu0 %507
      %509 = vrot.lane.b32.xlu0 %v442, 92
      %v510 = vpop.permute.xlu0 %509
      %511 = vrot.lane.b32.xlu0 %v443, 92
      %v512 = vpop.permute.xlu0 %511
      %vm513 = vcmask 752640
      %v514 = vsel %vm513, %v508, %v510
      %v515 = vsel %vm513, %v510, %v512
      %519 = vrot.lane.b32.xlu0 %v441, 91
      %v520 = vpop.permute.xlu0 %519
      %521 = vrot.lane.b32.xlu0 %v442, 91
      %v522 = vpop.permute.xlu0 %521
      %523 = vrot.lane.b32.xlu0 %v443, 91
      %v524 = vpop.permute.xlu0 %523
      %vm525 = vcmask 744448
      %v526 = vsel %vm525, %v520, %v522
      %v527 = vsel %vm525, %v522, %v524
      %531 = vrot.lane.b32.xlu0 %v441, 90
      %v532 = vpop.permute.xlu0 %531
      %533 = vrot.lane.b32.xlu0 %v442, 90
      %v534 = vpop.permute.xlu0 %533
      %535 = vrot.lane.b32.xlu0 %v443, 90
      %v536 = vpop.permute.xlu0 %535
      %vm537 = vcmask 736256
      %v538 = vsel %vm537, %v532, %v534
      %v539 = vsel %vm537, %v534, %v536
      %v543 = vld [vmem:[%s1] sm:$0xff]
      %v544 = vld [vmem:[%s2] sm:$0xff]
      %546 = vset.pattern.permute.xlu0 0
      %547 = vperm.xlu0 %546, %v544
      %v548 = vpop.permute.xlu0 %547
      %vm550 = vcmask 588800
      %v552 = vsel %vm550, %v543, 0
      %554 = vmatpush.msra.mxu0 0.0
      %555 = vmatpush.msra.mxu0 0.0
      %556 = vmatpush.msra.mxu0 0.0
      %557 = vmatpush.msra.mxu0 0.0
      %558 = vmatpush.msra.mxu0 0.0
      %559 = vmatpush.msra.mxu0 0.0
      %560 = vmatpush.msra.mxu0 0.0
      %561 = vmatpush.msra.mxu0 %v538
      %562 = vmatpush.msra.mxu0 %v526
      %563 = vmatpush.msra.mxu0 %v514
      %564 = vmatpush.msra.mxu0 %v502
      %565 = vmatpush.msra.mxu0 %v490
      %566 = vmatpush.msra.mxu0 %v478
      %567 = vmatpush.msra.mxu0 %v466
      %568 = vmatpush.msra.mxu0 %v454
      %569 = vmatpush.msra.mxu0 %v441
      %570 = vmatmul.f32.gmra.mxu0 %v552
      %v571 = vpop.f32.mrf.mxu0
      %v572 = vadd.f32 %v548, %v571
      %573 = vdwg.mxu0
      %574 = vmatpush.msra.mxu0 0.0
      %575 = vmatpush.msra.mxu0 0.0
      %576 = vmatpush.msra.mxu0 0.0
      %577 = vmatpush.msra.mxu0 0.0
      %578 = vmatpush.msra.mxu0 0.0
      %579 = vmatpush.msra.mxu0 0.0
      %580 = vmatpush.msra.mxu0 0.0
      %581 = vmatpush.msra.mxu0 %v539
      %582 = vmatpush.msra.mxu0 %v527
      %583 = vmatpush.msra.mxu0 %v515
      %584 = vmatpush.msra.mxu0 %v503
      %585 = vmatpush.msra.mxu0 %v491
      %586 = vmatpush.msra.mxu0 %v479
      %587 = vmatpush.msra.mxu0 %v467
      %588 = vmatpush.msra.mxu0 %v455
      %589 = vmatpush.msra.mxu0 %v442
      %590 = vmatmul.f32.gmra.mxu0 %v552
      %v591 = vpop.f32.mrf.mxu0
      %v592 = vadd.f32 %v548, %v591
      %593 = vdwg.mxu0
      %594 = vmatpush.msra.mxu0 0.0
      %595 = vmatpush.msra.mxu0 0.0
      %596 = vmatpush.msra.mxu0 0.0
      %597 = vmatpush.msra.mxu0 0.0
      %598 = vmatpush.msra.mxu0 0.0
      %599 = vmatpush.msra.mxu0 0.0
      %600 = vmatpush.msra.mxu0 0.0
      %601 = vmatpush.msra.mxu0 %v536
      %602 = vmatpush.msra.mxu0 %v524
      %603 = vmatpush.msra.mxu0 %v512
      %604 = vmatpush.msra.mxu0 %v500
      %605 = vmatpush.msra.mxu0 %v488
      %606 = vmatpush.msra.mxu0 %v476
      %607 = vmatpush.msra.mxu0 %v464
      %608 = vmatpush.msra.mxu0 %v452
      %609 = vmatpush.msra.mxu0 %v443
      %610 = vmatmul.f32.gmra.mxu0 %v552
      %v611 = vpop.f32.mrf.mxu0
      %v612 = vadd.f32 %v548, %v611
      %613 = vdwg.mxu0
      %v614 = vmax.f32 %v572, 0.0
      %v615 = vmax.f32 %v592, 0.0
      %v616 = vmax.f32 %v612, 0.0
      %v617 = vld [vmem:[%s9] sm:$0xff]
      %v618 = vld [vmem:[%s9 + $0x8] sm:$0xff]
      %v619 = vld [vmem:[%s9 + $0x10] sm:$0xff]
      %v620 = vld [vmem:[%s9 + $0x18] sm:$0xff]
      %v621 = vld [vmem:[%s9 + $0x20] sm:$0xff]
      %v622 = vld [vmem:[%s9 + $0x28] sm:$0xff]
      %v623 = vld [vmem:[%s9 + $0x30] sm:$0xff]
      %v624 = vld [vmem:[%s9 + $0x38] sm:$0xff]
      %v625 = vld [vmem:[%s9 + $0x40] sm:$0xff]
      %v626 = vld [vmem:[%s9 + $0x48] sm:$0xff]
      %v627 = vld [vmem:[%s9 + $0x50] sm:$0xff]
      %v628 = vld [vmem:[%s9 + $0x58] sm:$0xff]
      %v629 = vld [vmem:[%s9 + $0x60] sm:$0xff]
      %v630 = vld [vmem:[%s9 + $0x68] sm:$0xff]
      %v631 = vld [vmem:[%s9 + $0x70] sm:$0xff]
      %v632 = vld [vmem:[%s9 + $0x78] sm:$0xff]
      %v633 = vld [vmem:[%s9 + $0x80] sm:$0xff]
      %v634 = vld [vmem:[%s9 + $0x88] sm:$0xff]
      %v635 = vld [vmem:[%s9 + $0x90] sm:$0xff]
      %v636 = vld [vmem:[%s9 + $0x98] sm:$0xff]
      %v637 = vld [vmem:[%s9 + $0xa0] sm:$0xff]
      %v638 = vld [vmem:[%s9 + $0xa8] sm:$0xff]
      %v639 = vld [vmem:[%s9 + $0xb0] sm:$0xff]
      %v640 = vld [vmem:[%s9 + $0xb8] sm:$0xff]
      %v641 = vld [vmem:[%s9 + $0xc0] sm:$0xff]
      %v642 = vld [vmem:[%s9 + $0xc8] sm:$0xff]
      %v643 = vld [vmem:[%s9 + $0xd0] sm:$0xff]
      %v644 = vld [vmem:[%s9 + $0xd8] sm:$0xff]
      %v645 = vld [vmem:[%s9 + $0xe0] sm:$0xff]
      %v646 = vld [vmem:[%s9 + $0xe8] sm:$0xff]
      %v647 = vld [vmem:[%s9 + $0xf0] sm:$0xff]
      %v648 = vld [vmem:[%s9 + $0xf8] sm:$0xff]
      %v649 = vld [vmem:[%s9 + $0x100] sm:$0xff]
      %v650 = vld [vmem:[%s9 + $0x108] sm:$0xff]
      %v651 = vld [vmem:[%s9 + $0x110] sm:$0xff]
      %v652 = vld [vmem:[%s9 + $0x118] sm:$0xff]
      %v653 = vld [vmem:[%s9 + $0x120] sm:$0xff]
      %v654 = vld [vmem:[%s9 + $0x128] sm:$0xff]
      %v655 = vld [vmem:[%s9 + $0x130] sm:$0xff]
      %v656 = vld [vmem:[%s9 + $0x138] sm:$0xff]
      %v657 = vld [vmem:[%s9 + $0x140] sm:$0xff]
      %v658 = vld [vmem:[%s9 + $0x148] sm:$0xff]
      %v659 = vld [vmem:[%s9 + $0x150] sm:$0xff]
      %v660 = vld [vmem:[%s9 + $0x158] sm:$0xff]
      %v661 = vld [vmem:[%s9 + $0x160] sm:$0xff]
      %v662 = vld [vmem:[%s9 + $0x168] sm:$0xff]
      %v663 = vld [vmem:[%s9 + $0x170] sm:$0xff]
      %v664 = vld [vmem:[%s9 + $0x178] sm:$0xff]
      %v665 = vld [vmem:[%s9 + $0x180] sm:$0xff]
      %v666 = vld [vmem:[%s9 + $0x188] sm:$0xff]
      %v667 = vld [vmem:[%s9 + $0x190] sm:$0xff]
      %v668 = vld [vmem:[%s9 + $0x198] sm:$0xff]
      %v669 = vld [vmem:[%s9 + $0x1a0] sm:$0xff]
      %v670 = vld [vmem:[%s9 + $0x1a8] sm:$0xff]
      %v671 = vld [vmem:[%s9 + $0x1b0] sm:$0xff]
      %v672 = vld [vmem:[%s9 + $0x1b8] sm:$0xff]
      %v673 = vld [vmem:[%s9 + $0x1c0] sm:$0xff]
      %v674 = vld [vmem:[%s9 + $0x1c8] sm:$0xff]
      %v675 = vld [vmem:[%s9 + $0x1d0] sm:$0xff]
      %v676 = vld [vmem:[%s9 + $0x1d8] sm:$0xff]
      %v677 = vld [vmem:[%s9 + $0x1e0] sm:$0xff]
      %v678 = vld [vmem:[%s9 + $0x1e8] sm:$0xff]
      %v679 = vld [vmem:[%s9 + $0x1f0] sm:$0xff]
      %v680 = vld [vmem:[%s9 + $0x1f8] sm:$0xff]
      %v681 = vld [vmem:[%s9 + $0x200] sm:$0xff]
      %v682 = vld [vmem:[%s9 + $0x208] sm:$0xff]
      %v683 = vld [vmem:[%s9 + $0x210] sm:$0xff]
      %v684 = vld [vmem:[%s9 + $0x218] sm:$0xff]
      %v685 = vld [vmem:[%s9 + $0x220] sm:$0xff]
      %v686 = vld [vmem:[%s9 + $0x228] sm:$0xff]
      %v687 = vld [vmem:[%s9 + $0x230] sm:$0xff]
      %v688 = vld [vmem:[%s9 + $0x238] sm:$0xff]
      %v689 = vld [vmem:[%s9 + $0x240] sm:$0xff]
      %v690 = vld [vmem:[%s9 + $0x248] sm:$0xff]
      %v691 = vld [vmem:[%s9 + $0x250] sm:$0xff]
      %v692 = vld [vmem:[%s9 + $0x258] sm:$0xff]
      %v693 = vld [vmem:[%s9 + $0x260] sm:$0xff]
      %v694 = vld [vmem:[%s9 + $0x268] sm:$0xff]
      %v695 = vld [vmem:[%s9 + $0x270] sm:$0xff]
      %v696 = vld [vmem:[%s9 + $0x278] sm:$0xff]
      %v697 = vld [vmem:[%s9 + $0x280] sm:$0xff]
      %v698 = vld [vmem:[%s9 + $0x288] sm:$0xff]
      %v699 = vld [vmem:[%s9 + $0x290] sm:$0xff]
      %v700 = vld [vmem:[%s9 + $0x298] sm:$0xff]
      %v701 = vld [vmem:[%s9 + $0x2a0] sm:$0xff]
      %v702 = vld [vmem:[%s9 + $0x2a8] sm:$0xff]
      %v703 = vld [vmem:[%s9 + $0x2b0] sm:$0xff]
      %v704 = vld [vmem:[%s9 + $0x2b8] sm:$0xff]
      %v705 = vld [vmem:[%s9 + $0x2c0] sm:$0xff]
      %v706 = vld [vmem:[%s9 + $0x2c8] sm:$0xff]
      %v707 = vld [vmem:[%s9 + $0x2d0] sm:$0xff]
      %v708 = vld [vmem:[%s9 + $0x2d8] sm:$0xff]
      %v709 = vld [vmem:[%s9 + $0x2e0] sm:$0xff]
      %v710 = vld [vmem:[%s9 + $0x2e8] sm:$0xff]
      %v711 = vld [vmem:[%s9 + $0x2f0] sm:$0xff]
      %v712 = vld [vmem:[%s9 + $0x2f8] sm:$0xff]
      %v713 = vld [vmem:[%s9 + $0x300] sm:$0xff]
      %v714 = vld [vmem:[%s9 + $0x308] sm:$0xff]
      %v715 = vld [vmem:[%s9 + $0x310] sm:$0xff]
      %v716 = vld [vmem:[%s9 + $0x318] sm:$0xff]
      %v717 = vld [vmem:[%s9 + $0x320] sm:$0xff]
      %v718 = vld [vmem:[%s9 + $0x328] sm:$0xff]
      %v719 = vld [vmem:[%s9 + $0x330] sm:$0xff]
      %v720 = vld [vmem:[%s9 + $0x338] sm:$0xff]
      %v721 = vld [vmem:[%s9 + $0x340] sm:$0xff]
      %v722 = vld [vmem:[%s9 + $0x348] sm:$0xff]
      %v723 = vld [vmem:[%s9 + $0x350] sm:$0xff]
      %v724 = vld [vmem:[%s9 + $0x358] sm:$0xff]
      %vm725 = vcmask 261120
      %v727 = vsel %vm725, %v616, 0
      %729 = vmatpush.msra.mxu0 %v662
      %730 = vmatpush.msra.mxu0 %v659
      %731 = vmatpush.msra.mxu0 %v656
      %732 = vmatpush.msra.mxu0 %v653
      %733 = vmatpush.msra.mxu0 %v650
      %734 = vmatpush.msra.mxu0 %v647
      %735 = vmatpush.msra.mxu0 %v644
      %736 = vmatpush.msra.mxu0 %v641
      %737 = vmatpush.msra.mxu0 %v638
      %738 = vmatpush.msra.mxu0 %v635
      %739 = vmatpush.msra.mxu0 %v632
      %740 = vmatpush.msra.mxu0 %v629
      %741 = vmatpush.msra.mxu0 %v626
      %742 = vmatpush.msra.mxu0 %v623
      %743 = vmatpush.msra.mxu0 %v620
      %744 = vmatpush.msra.mxu0 %v617
      %745 = vmatmul.f32.gmra.mxu0 %v614
      %v746 = vpop.f32.mrf.mxu0
      %v747 = vadd.f32 0.0, %v746
      %748 = vdwg.mxu0
      %749 = vmatpush.msra.mxu0 %v710
      %750 = vmatpush.msra.mxu0 %v707
      %751 = vmatpush.msra.mxu0 %v704
      %752 = vmatpush.msra.mxu0 %v701
      %753 = vmatpush.msra.mxu0 %v698
      %754 = vmatpush.msra.mxu0 %v695
      %755 = vmatpush.msra.mxu0 %v692
      %756 = vmatpush.msra.mxu0 %v689
      %757 = vmatpush.msra.mxu0 %v686
      %758 = vmatpush.msra.mxu0 %v683
      %759 = vmatpush.msra.mxu0 %v680
      %760 = vmatpush.msra.mxu0 %v677
      %761 = vmatpush.msra.mxu0 %v674
      %762 = vmatpush.msra.mxu0 %v671
      %763 = vmatpush.msra.mxu0 %v668
      %764 = vmatpush.msra.mxu0 %v665
      %765 = vmatmul.f32.gmra.mxu0 %v615
      %v766 = vpop.f32.mrf.mxu0
      %v767 = vadd.f32 %v747, %v766
      %768 = vdwg.mxu0
      %769 = vmatpush.msra.mxu0 0.0
      %770 = vmatpush.msra.mxu0 0.0
      %771 = vmatpush.msra.mxu0 0.0
      %772 = vmatpush.msra.mxu0 0.0
      %773 = vmatpush.msra.mxu0 0.0
      %774 = vmatpush.msra.mxu0 0.0
      %775 = vmatpush.msra.mxu0 0.0
      %776 = vmatpush.msra.mxu0 0.0
      %777 = vmatpush.msra.mxu0 0.0
      %778 = vmatpush.msra.mxu0 0.0
      %779 = vmatpush.msra.mxu0 0.0
      %780 = vmatpush.msra.mxu0 0.0
      %781 = vmatpush.msra.mxu0 %v722
      %782 = vmatpush.msra.mxu0 %v719
      %783 = vmatpush.msra.mxu0 %v716
      %784 = vmatpush.msra.mxu0 %v713
      %785 = vmatmul.f32.gmra.mxu0 %v727
      %v786 = vpop.f32.mrf.mxu0
      %v787 = vadd.f32 %v767, %v786
      %788 = vdwg.mxu0
      %789 = vmatpush.msra.mxu0 %v663
      %790 = vmatpush.msra.mxu0 %v660
      %791 = vmatpush.msra.mxu0 %v657
      %792 = vmatpush.msra.mxu0 %v654
      %793 = vmatpush.msra.mxu0 %v651
      %794 = vmatpush.msra.mxu0 %v648
      %795 = vmatpush.msra.mxu0 %v645
      %796 = vmatpush.msra.mxu0 %v642
      %797 = vmatpush.msra.mxu0 %v639
      %798 = vmatpush.msra.mxu0 %v636
      %799 = vmatpush.msra.mxu0 %v633
      %800 = vmatpush.msra.mxu0 %v630
      %801 = vmatpush.msra.mxu0 %v627
      %802 = vmatpush.msra.mxu0 %v624
      %803 = vmatpush.msra.mxu0 %v621
      %804 = vmatpush.msra.mxu0 %v618
      %805 = vmatmul.f32.gmra.mxu0 %v614
      %v806 = vpop.f32.mrf.mxu0
      %v807 = vadd.f32 0.0, %v806
      %808 = vdwg.mxu0
      %809 = vmatpush.msra.mxu0 %v711
      %810 = vmatpush.msra.mxu0 %v708
      %811 = vmatpush.msra.mxu0 %v705
      %812 = vmatpush.msra.mxu0 %v702
      %813 = vmatpush.msra.mxu0 %v699
      %814 = vmatpush.msra.mxu0 %v696
      %815 = vmatpush.msra.mxu0 %v693
      %816 = vmatpush.msra.mxu0 %v690
      %817 = vmatpush.msra.mxu0 %v687
      %818 = vmatpush.msra.mxu0 %v684
      %819 = vmatpush.msra.mxu0 %v681
      %820 = vmatpush.msra.mxu0 %v678
      %821 = vmatpush.msra.mxu0 %v675
      %822 = vmatpush.msra.mxu0 %v672
      %823 = vmatpush.msra.mxu0 %v669
      %824 = vmatpush.msra.mxu0 %v666
      %825 = vmatmul.f32.gmra.mxu0 %v615
      %v826 = vpop.f32.mrf.mxu0
      %v827 = vadd.f32 %v807, %v826
      %828 = vdwg.mxu0
      %829 = vmatpush.msra.mxu0 0.0
      %830 = vmatpush.msra.mxu0 0.0
      %831 = vmatpush.msra.mxu0 0.0
      %832 = vmatpush.msra.mxu0 0.0
      %833 = vmatpush.msra.mxu0 0.0
      %834 = vmatpush.msra.mxu0 0.0
      %835 = vmatpush.msra.mxu0 0.0
      %836 = vmatpush.msra.mxu0 0.0
      %837 = vmatpush.msra.mxu0 0.0
      %838 = vmatpush.msra.mxu0 0.0
      %839 = vmatpush.msra.mxu0 0.0
      %840 = vmatpush.msra.mxu0 0.0
      %841 = vmatpush.msra.mxu0 %v723
      %842 = vmatpush.msra.mxu0 %v720
      %843 = vmatpush.msra.mxu0 %v717
      %844 = vmatpush.msra.mxu0 %v714
      %845 = vmatmul.f32.gmra.mxu0 %v727
      %v846 = vpop.f32.mrf.mxu0
      %v847 = vadd.f32 %v827, %v846
      %848 = vdwg.mxu0
      %849 = vmatpush.msra.mxu0 %v664
      %850 = vmatpush.msra.mxu0 %v661
      %851 = vmatpush.msra.mxu0 %v658
      %852 = vmatpush.msra.mxu0 %v655
      %853 = vmatpush.msra.mxu0 %v652
      %854 = vmatpush.msra.mxu0 %v649
      %855 = vmatpush.msra.mxu0 %v646
      %856 = vmatpush.msra.mxu0 %v643
      %857 = vmatpush.msra.mxu0 %v640
      %858 = vmatpush.msra.mxu0 %v637
      %859 = vmatpush.msra.mxu0 %v634
      %860 = vmatpush.msra.mxu0 %v631
      %861 = vmatpush.msra.mxu0 %v628
      %862 = vmatpush.msra.mxu0 %v625
      %863 = vmatpush.msra.mxu0 %v622
      %864 = vmatpush.msra.mxu0 %v619
      %865 = vmatmul.f32.gmra.mxu0 %v614
      %v866 = vpop.f32.mrf.mxu0
      %v867 = vadd.f32 0.0, %v866
      %868 = vdwg.mxu0
      %869 = vmatpush.msra.mxu0 %v712
      %870 = vmatpush.msra.mxu0 %v709
      %871 = vmatpush.msra.mxu0 %v706
      %872 = vmatpush.msra.mxu0 %v703
      %873 = vmatpush.msra.mxu0 %v700
      %874 = vmatpush.msra.mxu0 %v697
      %875 = vmatpush.msra.mxu0 %v694
      %876 = vmatpush.msra.mxu0 %v691
      %877 = vmatpush.msra.mxu0 %v688
      %878 = vmatpush.msra.mxu0 %v685
      %879 = vmatpush.msra.mxu0 %v682
      %880 = vmatpush.msra.mxu0 %v679
      %881 = vmatpush.msra.mxu0 %v676
      %882 = vmatpush.msra.mxu0 %v673
      %883 = vmatpush.msra.mxu0 %v670
      %884 = vmatpush.msra.mxu0 %v667
      %885 = vmatmul.f32.gmra.mxu0 %v615
      %v886 = vpop.f32.mrf.mxu0
      %v887 = vadd.f32 %v867, %v886
      %888 = vdwg.mxu0
      %889 = vmatpush.msra.mxu0 0.0
      %890 = vmatpush.msra.mxu0 0.0
      %891 = vmatpush.msra.mxu0 0.0
      %892 = vmatpush.msra.mxu0 0.0
      %893 = vmatpush.msra.mxu0 0.0
      %894 = vmatpush.msra.mxu0 0.0
      %895 = vmatpush.msra.mxu0 0.0
      %896 = vmatpush.msra.mxu0 0.0
      %897 = vmatpush.msra.mxu0 0.0
      %898 = vmatpush.msra.mxu0 0.0
      %899 = vmatpush.msra.mxu0 0.0
      %900 = vmatpush.msra.mxu0 0.0
      %901 = vmatpush.msra.mxu0 %v724
      %902 = vmatpush.msra.mxu0 %v721
      %903 = vmatpush.msra.mxu0 %v718
      %904 = vmatpush.msra.mxu0 %v715
      %905 = vmatmul.f32.gmra.mxu0 %v727
      %v906 = vpop.f32.mrf.mxu0
      %v907 = vadd.f32 %v887, %v906
      %908 = vdwg.mxu0
      %912 = vrot.lane.b32.xlu0 %v787, 127
      %v913 = vpop.permute.xlu0 %912
      %914 = vrot.lane.b32.xlu0 %v847, 127
      %v915 = vpop.permute.xlu0 %914
      %916 = vrot.lane.b32.xlu0 %v907, 127
      %v917 = vpop.permute.xlu0 %916
      %v918 = vsel %vm453, %v913, %v915
      %v919 = vsel %vm453, %v915, %v917
      %v923 = vmax.f32 %v787, %v918
      %v924 = vmax.f32 %v847, %v919
      %v925 = vmax.f32 %v907, %v917
      %929 = vrot.lane.b32.xlu0 %v923, 110
      %v930 = vpop.permute.xlu0 %929
      %931 = vrot.lane.b32.xlu0 %v924, 110
      %v932 = vpop.permute.xlu0 %931
      %933 = vrot.lane.b32.xlu0 %v925, 110
      %v934 = vpop.permute.xlu0 %933
      %v935 = vsel %vm477, %v930, %v932
      %v936 = vsel %vm477, %v932, %v934
      %v940 = vmax.f32 %v923, %v935
      %v941 = vmax.f32 %v924, %v936
      %v942 = vmax.f32 %v925, %v934
      %v943 = vld [vmem:[%s10] sm:$0xff]
      %v944 = vld [vmem:[%s10 + $0x8] sm:$0xff]
      %v945 = vld [vmem:[%s10 + $0x10] sm:$0xff]
      %v946 = vld [vmem:[%s10 + $0x18] sm:$0xff]
      %v947 = vld [vmem:[%s10 + $0x20] sm:$0xff]
      %v948 = vld [vmem:[%s10 + $0x28] sm:$0xff]
      %v949 = vld [vmem:[%s10 + $0x30] sm:$0xff]
      %v950 = vld [vmem:[%s10 + $0x38] sm:$0xff]
      %v951 = vld [vmem:[%s10 + $0x40] sm:$0xff]
      %v952 = vld [vmem:[%s10 + $0x48] sm:$0xff]
      %v953 = vld [vmem:[%s10 + $0x50] sm:$0xff]
      %v954 = vld [vmem:[%s10 + $0x58] sm:$0xff]
      %v955 = vld [vmem:[%s10 + $0x60] sm:$0xff]
      %v956 = vld [vmem:[%s10 + $0x68] sm:$0xff]
      %v957 = vld [vmem:[%s10 + $0x70] sm:$0xff]
      %v958 = vld [vmem:[%s10 + $0x78] sm:$0xff]
      %v959 = vld [vmem:[%s10 + $0x80] sm:$0xff]
      %v960 = vld [vmem:[%s10 + $0x88] sm:$0xff]
      %v961 = vld [vmem:[%s10 + $0x90] sm:$0xff]
      %v962 = vld [vmem:[%s10 + $0x98] sm:$0xff]
      %v963 = vld [vmem:[%s10 + $0xa0] sm:$0xff]
      %v964 = vld [vmem:[%s10 + $0xa8] sm:$0xff]
      %v965 = vld [vmem:[%s10 + $0xb0] sm:$0xff]
      %v966 = vld [vmem:[%s10 + $0xb8] sm:$0xff]
      %v967 = vld [vmem:[%s10 + $0xc0] sm:$0xff]
      %v968 = vld [vmem:[%s10 + $0xc8] sm:$0xff]
      %v969 = vld [vmem:[%s10 + $0xd0] sm:$0xff]
      %v970 = vld [vmem:[%s10 + $0xd8] sm:$0xff]
      %v971 = vld [vmem:[%s10 + $0xe0] sm:$0xff]
      %v972 = vld [vmem:[%s10 + $0xe8] sm:$0xff]
      %v973 = vld [vmem:[%s10 + $0xf0] sm:$0xff]
      %v974 = vld [vmem:[%s10 + $0xf8] sm:$0xff]
      %v975 = vld [vmem:[%s10 + $0x100] sm:$0xff]
      %v976 = vld [vmem:[%s10 + $0x108] sm:$0xff]
      %v977 = vld [vmem:[%s10 + $0x110] sm:$0xff]
      %v978 = vld [vmem:[%s10 + $0x118] sm:$0xff]
      %982 = vrot.lane.b32.xlu0 %v940, 109
      %v983 = vpop.permute.xlu0 %982
      %984 = vrot.lane.b32.xlu0 %v941, 109
      %v985 = vpop.permute.xlu0 %984
      %986 = vrot.lane.b32.xlu0 %v942, 109
      %v987 = vpop.permute.xlu0 %986
      %v988 = vsel %vm489, %v983, %v985
      %v989 = vsel %vm489, %v985, %v987
      %v992 = vsel %vm725, %v987, 0
      %994 = vmatpush.msra.mxu0 %v958
      %995 = vmatpush.msra.mxu0 %v957
      %996 = vmatpush.msra.mxu0 %v956
      %997 = vmatpush.msra.mxu0 %v955
      %998 = vmatpush.msra.mxu0 %v954
      %999 = vmatpush.msra.mxu0 %v953
      %1000 = vmatpush.msra.mxu0 %v952
      %1001 = vmatpush.msra.mxu0 %v951
      %1002 = vmatpush.msra.mxu0 %v950
      %1003 = vmatpush.msra.mxu0 %v949
      %1004 = vmatpush.msra.mxu0 %v948
      %1005 = vmatpush.msra.mxu0 %v947
      %1006 = vmatpush.msra.mxu0 %v946
      %1007 = vmatpush.msra.mxu0 %v945
      %1008 = vmatpush.msra.mxu0 %v944
      %1009 = vmatpush.msra.mxu0 %v943
      %1010 = vmatmul.f32.gmra.mxu0 %v988
      %v1011 = vpop.f32.mrf.mxu0
      %v1012 = vadd.f32 0.0, %v1011
      %1013 = vdwg.mxu0
      %1014 = vmatpush.msra.mxu0 %v974
      %1015 = vmatpush.msra.mxu0 %v973
      %1016 = vmatpush.msra.mxu0 %v972
      %1017 = vmatpush.msra.mxu0 %v971
      %1018 = vmatpush.msra.mxu0 %v970
      %1019 = vmatpush.msra.mxu0 %v969
      %1020 = vmatpush.msra.mxu0 %v968
      %1021 = vmatpush.msra.mxu0 %v967
      %1022 = vmatpush.msra.mxu0 %v966
      %1023 = vmatpush.msra.mxu0 %v965
      %1024 = vmatpush.msra.mxu0 %v964
      %1025 = vmatpush.msra.mxu0 %v963
      %1026 = vmatpush.msra.mxu0 %v962
      %1027 = vmatpush.msra.mxu0 %v961
      %1028 = vmatpush.msra.mxu0 %v960
      %1029 = vmatpush.msra.mxu0 %v959
      %1030 = vmatmul.f32.gmra.mxu0 %v989
      %v1031 = vpop.f32.mrf.mxu0
      %v1032 = vadd.f32 %v1012, %v1031
      %1033 = vdwg.mxu0
      %1034 = vmatpush.msra.mxu0 0.0
      %1035 = vmatpush.msra.mxu0 0.0
      %1036 = vmatpush.msra.mxu0 0.0
      %1037 = vmatpush.msra.mxu0 0.0
      %1038 = vmatpush.msra.mxu0 0.0
      %1039 = vmatpush.msra.mxu0 0.0
      %1040 = vmatpush.msra.mxu0 0.0
      %1041 = vmatpush.msra.mxu0 0.0
      %1042 = vmatpush.msra.mxu0 0.0
      %1043 = vmatpush.msra.mxu0 0.0
      %1044 = vmatpush.msra.mxu0 0.0
      %1045 = vmatpush.msra.mxu0 0.0
      %1046 = vmatpush.msra.mxu0 %v978
      %1047 = vmatpush.msra.mxu0 %v977
      %1048 = vmatpush.msra.mxu0 %v976
      %1049 = vmatpush.msra.mxu0 %v975
      %1050 = vmatmul.f32.gmra.mxu0 %v992
      %v1051 = vpop.f32.mrf.mxu0
      %v1052 = vadd.f32 %v1032, %v1051
      %1053 = vdwg.mxu0
      %1055 = vrot.lane.b32.xlu0 %v1052, 127
      %v1056 = vpop.permute.xlu0 %1055
      %1058 = vrot.lane.b32.xlu0 %v1052, 126
      %v1059 = vpop.permute.xlu0 %1058
      %1061 = vrot.lane.b32.xlu0 %v1052, 118
      %v1062 = vpop.permute.xlu0 %1061
      %1064 = vrot.lane.b32.xlu0 %v1052, 117
      %v1065 = vpop.permute.xlu0 %1064
      %1067 = vrot.lane.b32.xlu0 %v1052, 116
      %v1068 = vpop.permute.xlu0 %1067
      %1070 = vrot.lane.b32.xlu0 %v1052, 108
      %v1071 = vpop.permute.xlu0 %1070
      %1073 = vrot.lane.b32.xlu0 %v1052, 107
      %v1074 = vpop.permute.xlu0 %1073
      %1076 = vrot.lane.b32.xlu0 %v1052, 106
      %v1077 = vpop.permute.xlu0 %1076
      %v1079 = vld [vmem:[%s3] sm:$0xff]
      %v1080 = vld [vmem:[%s3 + $0x8] sm:$0xff]
      %v1081 = vld [vmem:[%s4] sm:$0xff]
      %v1082 = vld [vmem:[%s4 + $0x8] sm:$0xff]
      %1084 = vset.pattern.permute.xlu0 0
      %1085 = vperm.xlu0 %1084, %v1081
      %v1086 = vpop.permute.xlu0 %1085
      %1089 = vset.pattern.permute.xlu0 0
      %1090 = vperm.xlu0 %1089, %v1082
      %v1091 = vpop.permute.xlu0 %1090
      %v1094 = vsel %vm550, %v1079, 0
      %v1097 = vsel %vm550, %v1080, 0
      %1099 = vmatpush.msra.mxu0 0.0
      %1100 = vmatpush.msra.mxu0 0.0
      %1101 = vmatpush.msra.mxu0 0.0
      %1102 = vmatpush.msra.mxu0 0.0
      %1103 = vmatpush.msra.mxu0 0.0
      %1104 = vmatpush.msra.mxu0 0.0
      %1105 = vmatpush.msra.mxu0 0.0
      %1106 = vmatpush.msra.mxu0 %v1077
      %1107 = vmatpush.msra.mxu0 %v1074
      %1108 = vmatpush.msra.mxu0 %v1071
      %1109 = vmatpush.msra.mxu0 %v1068
      %1110 = vmatpush.msra.mxu0 %v1065
      %1111 = vmatpush.msra.mxu0 %v1062
      %1112 = vmatpush.msra.mxu0 %v1059
      %1113 = vmatpush.msra.mxu0 %v1056
      %1114 = vmatpush.msra.mxu0 %v1052
      %1115 = vmatmul.f32.gmra.mxu0 %v1094
      %v1116 = vpop.f32.mrf.mxu0
      %v1117 = vadd.f32 %v1086, %v1116
      %1118 = vmatmul.f32.gmra.mxu0 %v1097
      %v1119 = vpop.f32.mrf.mxu0
      %v1120 = vadd.f32 %v1091, %v1119
      %1121 = vdwg.mxu0
      %v1122 = vmax.f32 %v1117, 0.0
      %v1123 = vmax.f32 %v1120, 0.0
      %v1124 = vld [vmem:[%s11] sm:$0xff]
      %v1125 = vld [vmem:[%s11 + $0x8] sm:$0xff]
      %v1126 = vld [vmem:[%s11 + $0x10] sm:$0xff]
      %v1127 = vld [vmem:[%s11 + $0x18] sm:$0xff]
      %v1128 = vld [vmem:[%s11 + $0x20] sm:$0xff]
      %v1129 = vld [vmem:[%s11 + $0x28] sm:$0xff]
      %v1130 = vld [vmem:[%s11 + $0x30] sm:$0xff]
      %v1131 = vld [vmem:[%s11 + $0x38] sm:$0xff]
      %v1132 = vld [vmem:[%s11 + $0x40] sm:$0xff]
      %v1133 = vld [vmem:[%s11 + $0x48] sm:$0xff]
      %v1134 = vld [vmem:[%s11 + $0x50] sm:$0xff]
      %v1135 = vld [vmem:[%s11 + $0x58] sm:$0xff]
      %v1136 = vld [vmem:[%s11 + $0x60] sm:$0xff]
      %v1137 = vld [vmem:[%s11 + $0x68] sm:$0xff]
      %v1138 = vld [vmem:[%s11 + $0x70] sm:$0xff]
      %v1139 = vld [vmem:[%s11 + $0x78] sm:$0xff]
      %v1140 = vld [vmem:[%s11 + $0x80] sm:$0xff]
      %v1141 = vld [vmem:[%s11 + $0x88] sm:$0xff]
      %v1142 = vld [vmem:[%s11 + $0x90] sm:$0xff]
      %v1143 = vld [vmem:[%s11 + $0x98] sm:$0xff]
      %v1144 = vld [vmem:[%s11 + $0xa0] sm:$0xff]
      %v1145 = vld [vmem:[%s11 + $0xa8] sm:$0xff]
      %v1146 = vld [vmem:[%s11 + $0xb0] sm:$0xff]
      %v1147 = vld [vmem:[%s11 + $0xb8] sm:$0xff]
      %v1148 = vld [vmem:[%s11 + $0xc0] sm:$0xff]
      %v1149 = vld [vmem:[%s11 + $0xc8] sm:$0xff]
      %v1150 = vld [vmem:[%s11 + $0xd0] sm:$0xff]
      %v1151 = vld [vmem:[%s11 + $0xd8] sm:$0xff]
      %v1152 = vld [vmem:[%s11 + $0xe0] sm:$0xff]
      %v1153 = vld [vmem:[%s11 + $0xe8] sm:$0xff]
      %vm1154 = vcmask 654336
      %v1156 = vsel %vm1154, %v1122, 0
      %v1159 = vsel %vm1154, %v1123, 0
      %1161 = vmatpush.msra.mxu0 0.0
      %1162 = vmatpush.msra.mxu0 0.0
      %1163 = vmatpush.msra.mxu0 0.0
      %1164 = vmatpush.msra.mxu0 0.0
      %1165 = vmatpush.msra.mxu0 0.0
      %1166 = vmatpush.msra.mxu0 0.0
      %1167 = vmatpush.msra.mxu0 %v1151
      %1168 = vmatpush.msra.mxu0 %v1148
      %1169 = vmatpush.msra.mxu0 %v1145
      %1170 = vmatpush.msra.mxu0 %v1142
      %1171 = vmatpush.msra.mxu0 %v1139
      %1172 = vmatpush.msra.mxu0 %v1136
      %1173 = vmatpush.msra.mxu0 %v1133
      %1174 = vmatpush.msra.mxu0 %v1130
      %1175 = vmatpush.msra.mxu0 %v1127
      %1176 = vmatpush.msra.mxu0 %v1124
      %1177 = vmatmul.f32.gmra.mxu0 %v1156
      %v1178 = vpop.f32.mrf.mxu0
      %v1179 = vadd.f32 0.0, %v1178
      %1180 = vmatmul.f32.gmra.mxu0 %v1159
      %v1181 = vpop.f32.mrf.mxu0
      %v1182 = vadd.f32 0.0, %v1181
      %1183 = vdwg.mxu0
      %1184 = vmatpush.msra.mxu0 0.0
      %1185 = vmatpush.msra.mxu0 0.0
      %1186 = vmatpush.msra.mxu0 0.0
      %1187 = vmatpush.msra.mxu0 0.0
      %1188 = vmatpush.msra.mxu0 0.0
      %1189 = vmatpush.msra.mxu0 0.0
      %1190 = vmatpush.msra.mxu0 %v1152
      %1191 = vmatpush.msra.mxu0 %v1149
      %1192 = vmatpush.msra.mxu0 %v1146
      %1193 = vmatpush.msra.mxu0 %v1143
      %1194 = vmatpush.msra.mxu0 %v1140
      %1195 = vmatpush.msra.mxu0 %v1137
      %1196 = vmatpush.msra.mxu0 %v1134
      %1197 = vmatpush.msra.mxu0 %v1131
      %1198 = vmatpush.msra.mxu0 %v1128
      %1199 = vmatpush.msra.mxu0 %v1125
      %1200 = vmatmul.f32.gmra.mxu0 %v1156
      %v1201 = vpop.f32.mrf.mxu0
      %v1202 = vadd.f32 0.0, %v1201
      %1203 = vmatmul.f32.gmra.mxu0 %v1159
      %v1204 = vpop.f32.mrf.mxu0
      %v1205 = vadd.f32 0.0, %v1204
      %1206 = vdwg.mxu0
      %1207 = vmatpush.msra.mxu0 0.0
      %1208 = vmatpush.msra.mxu0 0.0
      %1209 = vmatpush.msra.mxu0 0.0
      %1210 = vmatpush.msra.mxu0 0.0
      %1211 = vmatpush.msra.mxu0 0.0
      %1212 = vmatpush.msra.mxu0 0.0
      %1213 = vmatpush.msra.mxu0 %v1153
      %1214 = vmatpush.msra.mxu0 %v1150
      %1215 = vmatpush.msra.mxu0 %v1147
      %1216 = vmatpush.msra.mxu0 %v1144
      %1217 = vmatpush.msra.mxu0 %v1141
      %1218 = vmatpush.msra.mxu0 %v1138
      %1219 = vmatpush.msra.mxu0 %v1135
      %1220 = vmatpush.msra.mxu0 %v1132
      %1221 = vmatpush.msra.mxu0 %v1129
      %1222 = vmatpush.msra.mxu0 %v1126
      %1223 = vmatmul.f32.gmra.mxu0 %v1156
      %v1224 = vpop.f32.mrf.mxu0
      %v1225 = vadd.f32 0.0, %v1224
      %1226 = vmatmul.f32.gmra.mxu0 %v1159
      %v1227 = vpop.f32.mrf.mxu0
      %v1228 = vadd.f32 0.0, %v1227
      %1229 = vdwg.mxu0
      %1236 = vrot.lane.b32.xlu0 %v1179, 127
      %v1237 = vpop.permute.xlu0 %1236
      %1238 = vrot.lane.b32.xlu0 %v1202, 127
      %v1239 = vpop.permute.xlu0 %1238
      %1240 = vrot.lane.b32.xlu0 %v1225, 127
      %v1241 = vpop.permute.xlu0 %1240
      %1242 = vrot.lane.b32.xlu0 %v1182, 127
      %v1243 = vpop.permute.xlu0 %1242
      %1244 = vrot.lane.b32.xlu0 %v1205, 127
      %v1245 = vpop.permute.xlu0 %1244
      %1246 = vrot.lane.b32.xlu0 %v1228, 127
      %v1247 = vpop.permute.xlu0 %1246
      %v1248 = vsel %vm453, %v1237, %v1239
      %v1249 = vsel %vm453, %v1239, %v1241
      %v1250 = vsel %vm453, %v1243, %v1245
      %v1251 = vsel %vm453, %v1245, %v1247
      %1258 = vrot.lane.b32.xlu0 %v1179, 126
      %v1259 = vpop.permute.xlu0 %1258
      %1260 = vrot.lane.b32.xlu0 %v1202, 126
      %v1261 = vpop.permute.xlu0 %1260
      %1262 = vrot.lane.b32.xlu0 %v1225, 126
      %v1263 = vpop.permute.xlu0 %1262
      %1264 = vrot.lane.b32.xlu0 %v1182, 126
      %v1265 = vpop.permute.xlu0 %1264
      %1266 = vrot.lane.b32.xlu0 %v1205, 126
      %v1267 = vpop.permute.xlu0 %1266
      %1268 = vrot.lane.b32.xlu0 %v1228, 126
      %v1269 = vpop.permute.xlu0 %1268
      %v1270 = vsel %vm465, %v1259, %v1261
      %v1271 = vsel %vm465, %v1261, %v1263
      %v1272 = vsel %vm465, %v1265, %v1267
      %v1273 = vsel %vm465, %v1267, %v1269
      %1280 = vrot.lane.b32.xlu0 %v1179, 110
      %v1281 = vpop.permute.xlu0 %1280
      %1282 = vrot.lane.b32.xlu0 %v1202, 110
      %v1283 = vpop.permute.xlu0 %1282
      %1284 = vrot.lane.b32.xlu0 %v1225, 110
      %v1285 = vpop.permute.xlu0 %1284
      %1286 = vrot.lane.b32.xlu0 %v1182, 110
      %v1287 = vpop.permute.xlu0 %1286
      %1288 = vrot.lane.b32.xlu0 %v1205, 110
      %v1289 = vpop.permute.xlu0 %1288
      %1290 = vrot.lane.b32.xlu0 %v1228, 110
      %v1291 = vpop.permute.xlu0 %1290
      %v1292 = vsel %vm477, %v1281, %v1283
      %v1293 = vsel %vm477, %v1283, %v1285
      %v1294 = vsel %vm477, %v1287, %v1289
      %v1295 = vsel %vm477, %v1289, %v1291
      %1302 = vrot.lane.b32.xlu0 %v1179, 109
      %v1303 = vpop.permute.xlu0 %1302
      %1304 = vrot.lane.b32.xlu0 %v1202, 109
      %v1305 = vpop.permute.xlu0 %1304
      %1306 = vrot.lane.b32.xlu0 %v1225, 109
      %v1307 = vpop.permute.xlu0 %1306
      %1308 = vrot.lane.b32.xlu0 %v1182, 109
      %v1309 = vpop.permute.xlu0 %1308
      %1310 = vrot.lane.b32.xlu0 %v1205, 109
      %v1311 = vpop.permute.xlu0 %1310
      %1312 = vrot.lane.b32.xlu0 %v1228, 109
      %v1313 = vpop.permute.xlu0 %1312
      %v1314 = vsel %vm489, %v1303, %v1305
      %v1315 = vsel %vm489, %v1305, %v1307
      %v1316 = vsel %vm489, %v1309, %v1311
      %v1317 = vsel %vm489, %v1311, %v1313
      %1324 = vrot.lane.b32.xlu0 %v1179, 108
      %v1325 = vpop.permute.xlu0 %1324
      %1326 = vrot.lane.b32.xlu0 %v1202, 108
      %v1327 = vpop.permute.xlu0 %1326
      %1328 = vrot.lane.b32.xlu0 %v1225, 108
      %v1329 = vpop.permute.xlu0 %1328
      %1330 = vrot.lane.b32.xlu0 %v1182, 108
      %v1331 = vpop.permute.xlu0 %1330
      %1332 = vrot.lane.b32.xlu0 %v1205, 108
      %v1333 = vpop.permute.xlu0 %1332
      %1334 = vrot.lane.b32.xlu0 %v1228, 108
      %v1335 = vpop.permute.xlu0 %1334
      %v1336 = vsel %vm501, %v1325, %v1327
      %v1337 = vsel %vm501, %v1327, %v1329
      %v1338 = vsel %vm501, %v1331, %v1333
      %v1339 = vsel %vm501, %v1333, %v1335
      %1346 = vrot.lane.b32.xlu0 %v1179, 92
      %v1347 = vpop.permute.xlu0 %1346
      %1348 = vrot.lane.b32.xlu0 %v1202, 92
      %v1349 = vpop.permute.xlu0 %1348
      %1350 = vrot.lane.b32.xlu0 %v1225, 92
      %v1351 = vpop.permute.xlu0 %1350
      %1352 = vrot.lane.b32.xlu0 %v1182, 92
      %v1353 = vpop.permute.xlu0 %1352
      %1354 = vrot.lane.b32.xlu0 %v1205, 92
      %v1355 = vpop.permute.xlu0 %1354
      %1356 = vrot.lane.b32.xlu0 %v1228, 92
      %v1357 = vpop.permute.xlu0 %1356
      %v1358 = vsel %vm513, %v1347, %v1349
      %v1359 = vsel %vm513, %v1349, %v1351
      %v1360 = vsel %vm513, %v1353, %v1355
      %v1361 = vsel %vm513, %v1355, %v1357
      %1368 = vrot.lane.b32.xlu0 %v1179, 91
      %v1369 = vpop.permute.xlu0 %1368
      %1370 = vrot.lane.b32.xlu0 %v1202, 91
      %v1371 = vpop.permute.xlu0 %1370
      %1372 = vrot.lane.b32.xlu0 %v1225, 91
      %v1373 = vpop.permute.xlu0 %1372
      %1374 = vrot.lane.b32.xlu0 %v1182, 91
      %v1375 = vpop.permute.xlu0 %1374
      %1376 = vrot.lane.b32.xlu0 %v1205, 91
      %v1377 = vpop.permute.xlu0 %1376
      %1378 = vrot.lane.b32.xlu0 %v1228, 91
      %v1379 = vpop.permute.xlu0 %1378
      %v1380 = vsel %vm525, %v1369, %v1371
      %v1381 = vsel %vm525, %v1371, %v1373
      %v1382 = vsel %vm525, %v1375, %v1377
      %v1383 = vsel %vm525, %v1377, %v1379
      %1390 = vrot.lane.b32.xlu0 %v1179, 90
      %v1391 = vpop.permute.xlu0 %1390
      %1392 = vrot.lane.b32.xlu0 %v1202, 90
      %v1393 = vpop.permute.xlu0 %1392
      %1394 = vrot.lane.b32.xlu0 %v1225, 90
      %v1395 = vpop.permute.xlu0 %1394
      %1396 = vrot.lane.b32.xlu0 %v1182, 90
      %v1397 = vpop.permute.xlu0 %1396
      %1398 = vrot.lane.b32.xlu0 %v1205, 90
      %v1399 = vpop.permute.xlu0 %1398
      %1400 = vrot.lane.b32.xlu0 %v1228, 90
      %v1401 = vpop.permute.xlu0 %1400
      %v1402 = vsel %vm537, %v1391, %v1393
      %v1403 = vsel %vm537, %v1393, %v1395
      %v1404 = vsel %vm537, %v1397, %v1399
      %v1405 = vsel %vm537, %v1399, %v1401
      %1412 = vrot.lane.b32.xlu0 %v787, 126
      %v1413 = vpop.permute.xlu0 %1412
      %1414 = vrot.lane.b32.xlu0 %v847, 126
      %v1415 = vpop.permute.xlu0 %1414
      %1416 = vrot.lane.b32.xlu0 %v907, 126
      %v1417 = vpop.permute.xlu0 %1416
      %v1418 = vsel %vm465, %v1413, %v1415
      %v1419 = vsel %vm465, %v1415, %v1417
      %1423 = vrot.lane.b32.xlu0 %v787, 110
      %v1424 = vpop.permute.xlu0 %1423
      %1425 = vrot.lane.b32.xlu0 %v847, 110
      %v1426 = vpop.permute.xlu0 %1425
      %1427 = vrot.lane.b32.xlu0 %v907, 110
      %v1428 = vpop.permute.xlu0 %1427
      %v1429 = vsel %vm477, %v1424, %v1426
      %v1430 = vsel %vm477, %v1426, %v1428
      %1434 = vrot.lane.b32.xlu0 %v787, 109
      %v1435 = vpop.permute.xlu0 %1434
      %1436 = vrot.lane.b32.xlu0 %v847, 109
      %v1437 = vpop.permute.xlu0 %1436
      %1438 = vrot.lane.b32.xlu0 %v907, 109
      %v1439 = vpop.permute.xlu0 %1438
      %v1440 = vsel %vm489, %v1435, %v1437
      %v1441 = vsel %vm489, %v1437, %v1439
      %1445 = vrot.lane.b32.xlu0 %v787, 108
      %v1446 = vpop.permute.xlu0 %1445
      %1447 = vrot.lane.b32.xlu0 %v847, 108
      %v1448 = vpop.permute.xlu0 %1447
      %1449 = vrot.lane.b32.xlu0 %v907, 108
      %v1450 = vpop.permute.xlu0 %1449
      %v1451 = vsel %vm501, %v1446, %v1448
      %v1452 = vsel %vm501, %v1448, %v1450
      %1456 = vrot.lane.b32.xlu0 %v787, 92
      %v1457 = vpop.permute.xlu0 %1456
      %1458 = vrot.lane.b32.xlu0 %v847, 92
      %v1459 = vpop.permute.xlu0 %1458
      %1460 = vrot.lane.b32.xlu0 %v907, 92
      %v1461 = vpop.permute.xlu0 %1460
      %v1462 = vsel %vm513, %v1457, %v1459
      %v1463 = vsel %vm513, %v1459, %v1461
      %1467 = vrot.lane.b32.xlu0 %v787, 91
      %v1468 = vpop.permute.xlu0 %1467
      %1469 = vrot.lane.b32.xlu0 %v847, 91
      %v1470 = vpop.permute.xlu0 %1469
      %1471 = vrot.lane.b32.xlu0 %v907, 91
      %v1472 = vpop.permute.xlu0 %1471
      %v1473 = vsel %vm525, %v1468, %v1470
      %v1474 = vsel %vm525, %v1470, %v1472
      %1478 = vrot.lane.b32.xlu0 %v787, 90
      %v1479 = vpop.permute.xlu0 %1478
      %1480 = vrot.lane.b32.xlu0 %v847, 90
      %v1481 = vpop.permute.xlu0 %1480
      %1482 = vrot.lane.b32.xlu0 %v907, 90
      %v1483 = vpop.permute.xlu0 %1482
      %v1484 = vsel %vm537, %v1479, %v1481
      %v1485 = vsel %vm537, %v1481, %v1483
      %v1489 = vld [vmem:[%s5] sm:$0xff]
      %v1490 = vld [vmem:[%s5 + $0x8] sm:$0xff]
      %v1491 = vld [vmem:[%s6] sm:$0xff]
      %1493 = vset.pattern.permute.xlu0 0
      %1494 = vperm.xlu0 %1493, %v1491
      %v1495 = vpop.permute.xlu0 %1494
      %vm1497 = vcmask 719872
      %v1499 = vsel %vm1497, %v1490, 0
      %1501 = vmatpush.msra.mxu0 %v1382
      %1502 = vmatpush.msra.mxu0 %v1380
      %1503 = vmatpush.msra.mxu0 %v1360
      %1504 = vmatpush.msra.mxu0 %v1358
      %1505 = vmatpush.msra.mxu0 %v1338
      %1506 = vmatpush.msra.mxu0 %v1336
      %1507 = vmatpush.msra.mxu0 %v1316
      %1508 = vmatpush.msra.mxu0 %v1314
      %1509 = vmatpush.msra.mxu0 %v1294
      %1510 = vmatpush.msra.mxu0 %v1292
      %1511 = vmatpush.msra.mxu0 %v1272
      %1512 = vmatpush.msra.mxu0 %v1270
      %1513 = vmatpush.msra.mxu0 %v1250
      %1514 = vmatpush.msra.mxu0 %v1248
      %1515 = vmatpush.msra.mxu0 %v1182
      %1516 = vmatpush.msra.mxu0 %v1179
      %1517 = vmatmul.f32.gmra.mxu0 %v1489
      %v1518 = vpop.f32.mrf.mxu0
      %v1519 = vadd.f32 %v1495, %v1518
      %1520 = vdwg.mxu0
      %1521 = vmatpush.msra.mxu0 0.0
      %1522 = vmatpush.msra.mxu0 0.0
      %1523 = vmatpush.msra.mxu0 0.0
      %1524 = vmatpush.msra.mxu0 0.0
      %1525 = vmatpush.msra.mxu0 0.0
      %1526 = vmatpush.msra.mxu0 %v1484
      %1527 = vmatpush.msra.mxu0 %v1473
      %1528 = vmatpush.msra.mxu0 %v1462
      %1529 = vmatpush.msra.mxu0 %v1451
      %1530 = vmatpush.msra.mxu0 %v1440
      %1531 = vmatpush.msra.mxu0 %v1429
      %1532 = vmatpush.msra.mxu0 %v1418
      %1533 = vmatpush.msra.mxu0 %v918
      %1534 = vmatpush.msra.mxu0 %v787
      %1535 = vmatpush.msra.mxu0 %v1404
      %1536 = vmatpush.msra.mxu0 %v1402
      %1537 = vmatmul.f32.gmra.mxu0 %v1499
      %v1538 = vpop.f32.mrf.mxu0
      %v1539 = vadd.f32 %v1519, %v1538
      %1540 = vdwg.mxu0
      %1541 = vmatpush.msra.mxu0 %v1383
      %1542 = vmatpush.msra.mxu0 %v1381
      %1543 = vmatpush.msra.mxu0 %v1361
      %1544 = vmatpush.msra.mxu0 %v1359
      %1545 = vmatpush.msra.mxu0 %v1339
      %1546 = vmatpush.msra.mxu0 %v1337
      %1547 = vmatpush.msra.mxu0 %v1317
      %1548 = vmatpush.msra.mxu0 %v1315
      %1549 = vmatpush.msra.mxu0 %v1295
      %1550 = vmatpush.msra.mxu0 %v1293
      %1551 = vmatpush.msra.mxu0 %v1273
      %1552 = vmatpush.msra.mxu0 %v1271
      %1553 = vmatpush.msra.mxu0 %v1251
      %1554 = vmatpush.msra.mxu0 %v1249
      %1555 = vmatpush.msra.mxu0 %v1205
      %1556 = vmatpush.msra.mxu0 %v1202
      %1557 = vmatmul.f32.gmra.mxu0 %v1489
      %v1558 = vpop.f32.mrf.mxu0
      %v1559 = vadd.f32 %v1495, %v1558
      %1560 = vdwg.mxu0
      %1561 = vmatpush.msra.mxu0 0.0
      %1562 = vmatpush.msra.mxu0 0.0
      %1563 = vmatpush.msra.mxu0 0.0
      %1564 = vmatpush.msra.mxu0 0.0
      %1565 = vmatpush.msra.mxu0 0.0
      %1566 = vmatpush.msra.mxu0 %v1485
      %1567 = vmatpush.msra.mxu0 %v1474
      %1568 = vmatpush.msra.mxu0 %v1463
      %1569 = vmatpush.msra.mxu0 %v1452
      %1570 = vmatpush.msra.mxu0 %v1441
      %1571 = vmatpush.msra.mxu0 %v1430
      %1572 = vmatpush.msra.mxu0 %v1419
      %1573 = vmatpush.msra.mxu0 %v919
      %1574 = vmatpush.msra.mxu0 %v847
      %1575 = vmatpush.msra.mxu0 %v1405
      %1576 = vmatpush.msra.mxu0 %v1403
      %1577 = vmatmul.f32.gmra.mxu0 %v1499
      %v1578 = vpop.f32.mrf.mxu0
      %v1579 = vadd.f32 %v1559, %v1578
      %1580 = vdwg.mxu0
      %1581 = vmatpush.msra.mxu0 %v1379
      %1582 = vmatpush.msra.mxu0 %v1373
      %1583 = vmatpush.msra.mxu0 %v1357
      %1584 = vmatpush.msra.mxu0 %v1351
      %1585 = vmatpush.msra.mxu0 %v1335
      %1586 = vmatpush.msra.mxu0 %v1329
      %1587 = vmatpush.msra.mxu0 %v1313
      %1588 = vmatpush.msra.mxu0 %v1307
      %1589 = vmatpush.msra.mxu0 %v1291
      %1590 = vmatpush.msra.mxu0 %v1285
      %1591 = vmatpush.msra.mxu0 %v1269
      %1592 = vmatpush.msra.mxu0 %v1263
      %1593 = vmatpush.msra.mxu0 %v1247
      %1594 = vmatpush.msra.mxu0 %v1241
      %1595 = vmatpush.msra.mxu0 %v1228
      %1596 = vmatpush.msra.mxu0 %v1225
      %1597 = vmatmul.f32.gmra.mxu0 %v1489
      %v1598 = vpop.f32.mrf.mxu0
      %v1599 = vadd.f32 %v1495, %v1598
      %1600 = vdwg.mxu0
      %1601 = vmatpush.msra.mxu0 0.0
      %1602 = vmatpush.msra.mxu0 0.0
      %1603 = vmatpush.msra.mxu0 0.0
      %1604 = vmatpush.msra.mxu0 0.0
      %1605 = vmatpush.msra.mxu0 0.0
      %1606 = vmatpush.msra.mxu0 %v1483
      %1607 = vmatpush.msra.mxu0 %v1472
      %1608 = vmatpush.msra.mxu0 %v1461
      %1609 = vmatpush.msra.mxu0 %v1450
      %1610 = vmatpush.msra.mxu0 %v1439
      %1611 = vmatpush.msra.mxu0 %v1428
      %1612 = vmatpush.msra.mxu0 %v1417
      %1613 = vmatpush.msra.mxu0 %v917
      %1614 = vmatpush.msra.mxu0 %v907
      %1615 = vmatpush.msra.mxu0 %v1401
      %1616 = vmatpush.msra.mxu0 %v1395
      %1617 = vmatmul.f32.gmra.mxu0 %v1499
      %v1618 = vpop.f32.mrf.mxu0
      %v1619 = vadd.f32 %v1599, %v1618
      %1620 = vdwg.mxu0
      %v1621 = vmax.f32 %v1539, 0.0
      %v1622 = vmax.f32 %v1579, 0.0
      %v1623 = vmax.f32 %v1619, 0.0
      %v1624 = vld [vmem:[%s7] sm:$0x1]
      %vm1625 = vcmask 64512
      %v1627 = vsel %vm1625, %v1624, 0
      %1629 = vmatpush.msra.mxu0 0.0
      %1630 = vmatpush.msra.mxu0 0.0
      %1631 = vmatpush.msra.mxu0 0.0
      %1632 = vmatpush.msra.mxu0 0.0
      %1633 = vmatpush.msra.mxu0 0.0
      %1634 = vmatpush.msra.mxu0 0.0
      %1635 = vmatpush.msra.mxu0 0.0
      %1636 = vmatpush.msra.mxu0 0.0
      %1637 = vmatpush.msra.mxu0 0.0
      %1638 = vmatpush.msra.mxu0 0.0
      %1639 = vmatpush.msra.mxu0 0.0
      %1640 = vmatpush.msra.mxu0 0.0
      %1641 = vmatpush.msra.mxu0 0.0
      %1642 = vmatpush.msra.mxu0 0.0
      %1643 = vmatpush.msra.mxu0 0.0
      %1644 = vmatpush.msra.mxu0 %v1621
      %1645 = vmatmul.f32.gmra.mxu0 %v1627
      %v1646 = vpop.f32.mrf.mxu0
      %v1647 = vadd.f32 0.0, %v1646
      %1648 = vdwg.mxu0
      %1649 = vmatpush.msra.mxu0 0.0
      %1650 = vmatpush.msra.mxu0 0.0
      %1651 = vmatpush.msra.mxu0 0.0
      %1652 = vmatpush.msra.mxu0 0.0
      %1653 = vmatpush.msra.mxu0 0.0
      %1654 = vmatpush.msra.mxu0 0.0
      %1655 = vmatpush.msra.mxu0 0.0
      %1656 = vmatpush.msra.mxu0 0.0
      %1657 = vmatpush.msra.mxu0 0.0
      %1658 = vmatpush.msra.mxu0 0.0
      %1659 = vmatpush.msra.mxu0 0.0
      %1660 = vmatpush.msra.mxu0 0.0
      %1661 = vmatpush.msra.mxu0 0.0
      %1662 = vmatpush.msra.mxu0 0.0
      %1663 = vmatpush.msra.mxu0 0.0
      %1664 = vmatpush.msra.mxu0 %v1622
      %1665 = vmatmul.f32.gmra.mxu0 %v1627
      %v1666 = vpop.f32.mrf.mxu0
      %v1667 = vadd.f32 0.0, %v1666
      %1668 = vdwg.mxu0
      %1669 = vmatpush.msra.mxu0 0.0
      %1670 = vmatpush.msra.mxu0 0.0
      %1671 = vmatpush.msra.mxu0 0.0
      %1672 = vmatpush.msra.mxu0 0.0
      %1673 = vmatpush.msra.mxu0 0.0
      %1674 = vmatpush.msra.mxu0 0.0
      %1675 = vmatpush.msra.mxu0 0.0
      %1676 = vmatpush.msra.mxu0 0.0
      %1677 = vmatpush.msra.mxu0 0.0
      %1678 = vmatpush.msra.mxu0 0.0
      %1679 = vmatpush.msra.mxu0 0.0
      %1680 = vmatpush.msra.mxu0 0.0
      %1681 = vmatpush.msra.mxu0 0.0
      %1682 = vmatpush.msra.mxu0 0.0
      %1683 = vmatpush.msra.mxu0 0.0
      %1684 = vmatpush.msra.mxu0 %v1623
      %1685 = vmatmul.f32.gmra.mxu0 %v1627
      %v1686 = vpop.f32.mrf.mxu0
      %v1687 = vadd.f32 0.0, %v1686
      %1688 = vdwg.mxu0
      %v1689 = vld [vmem:[%s12] sm:$0xff]
      %v1690 = vld [vmem:[%s12 + $0x8] sm:$0xff]
      %v1691 = vld [vmem:[%s12 + $0x10] sm:$0xff]
      %v1692 = vld [vmem:[%s12 + $0x18] sm:$0xff]
      %v1693 = vld [vmem:[%s12 + $0x20] sm:$0xff]
      %v1694 = vld [vmem:[%s12 + $0x28] sm:$0xff]
      %v1695 = vld [vmem:[%s12 + $0x30] sm:$0xff]
      %v1696 = vld [vmem:[%s12 + $0x38] sm:$0xff]
      %v1697 = vld [vmem:[%s12 + $0x40] sm:$0xff]
      %v1698 = vld [vmem:[%s12 + $0x48] sm:$0xff]
      %v1699 = vld [vmem:[%s12 + $0x50] sm:$0xff]
      %v1700 = vld [vmem:[%s12 + $0x58] sm:$0xff]
      %v1701 = vld [vmem:[%s12 + $0x60] sm:$0xff]
      %v1702 = vld [vmem:[%s12 + $0x68] sm:$0xff]
      %v1703 = vld [vmem:[%s12 + $0x70] sm:$0xff]
      %v1704 = vld [vmem:[%s12 + $0x78] sm:$0xff]
      %v1705 = vld [vmem:[%s12 + $0x80] sm:$0xff]
      %v1706 = vld [vmem:[%s12 + $0x88] sm:$0xff]
      %v1707 = vld [vmem:[%s12 + $0x90] sm:$0xff]
      %v1708 = vld [vmem:[%s12 + $0x98] sm:$0xff]
      %v1709 = vld [vmem:[%s12 + $0xa0] sm:$0xff]
      %v1710 = vld [vmem:[%s12 + $0xa8] sm:$0xff]
      %v1711 = vld [vmem:[%s12 + $0xb0] sm:$0xff]
      %v1712 = vld [vmem:[%s12 + $0xb8] sm:$0xff]
      %v1713 = vld [vmem:[%s12 + $0xc0] sm:$0xff]
      %v1714 = vld [vmem:[%s12 + $0xc8] sm:$0xff]
      %v1715 = vld [vmem:[%s12 + $0xd0] sm:$0xff]
      %v1716 = vld [vmem:[%s12 + $0xd8] sm:$0xff]
      %v1717 = vld [vmem:[%s12 + $0xe0] sm:$0xff]
      %v1718 = vld [vmem:[%s12 + $0xe8] sm:$0xff]
      %v1719 = vld [vmem:[%s12 + $0xf0] sm:$0xff]
      %v1720 = vld [vmem:[%s12 + $0xf8] sm:$0xff]
      %v1721 = vld [vmem:[%s12 + $0x100] sm:$0xff]
      %v1722 = vld [vmem:[%s12 + $0x108] sm:$0xff]
      %v1723 = vld [vmem:[%s12 + $0x110] sm:$0xff]
      %v1724 = vld [vmem:[%s12 + $0x118] sm:$0xff]
      %v1725 = vld [vmem:[%s12 + $0x120] sm:$0xff]
      %v1726 = vld [vmem:[%s12 + $0x128] sm:$0xff]
      %v1727 = vld [vmem:[%s12 + $0x130] sm:$0xff]
      %v1728 = vld [vmem:[%s12 + $0x138] sm:$0xff]
      %v1729 = vld [vmem:[%s12 + $0x140] sm:$0xff]
      %v1730 = vld [vmem:[%s12 + $0x148] sm:$0xff]
      %v1731 = vld [vmem:[%s12 + $0x150] sm:$0xff]
      %v1732 = vld [vmem:[%s12 + $0x158] sm:$0xff]
      %v1733 = vld [vmem:[%s12 + $0x160] sm:$0xff]
      %v1734 = vld [vmem:[%s12 + $0x168] sm:$0xff]
      %v1735 = vld [vmem:[%s12 + $0x170] sm:$0xff]
      %v1736 = vld [vmem:[%s12 + $0x178] sm:$0xff]
      %v1737 = vld [vmem:[%s12 + $0x180] sm:$0xff]
      %v1738 = vld [vmem:[%s12 + $0x188] sm:$0xff]
      %v1739 = vld [vmem:[%s12 + $0x190] sm:$0xff]
      %v1740 = vld [vmem:[%s12 + $0x198] sm:$0xff]
      %v1741 = vld [vmem:[%s12 + $0x1a0] sm:$0xff]
      %v1742 = vld [vmem:[%s12 + $0x1a8] sm:$0xff]
      %v1743 = vld [vmem:[%s12 + $0x1b0] sm:$0xff]
      %v1744 = vld [vmem:[%s12 + $0x1b8] sm:$0xff]
      %v1745 = vld [vmem:[%s12 + $0x1c0] sm:$0xff]
      %v1746 = vld [vmem:[%s12 + $0x1c8] sm:$0xff]
      %v1747 = vld [vmem:[%s12 + $0x1d0] sm:$0xff]
      %v1748 = vld [vmem:[%s12 + $0x1d8] sm:$0xff]
      %v1749 = vld [vmem:[%s12 + $0x1e0] sm:$0xff]
      %v1750 = vld [vmem:[%s12 + $0x1e8] sm:$0xff]
      %v1751 = vld [vmem:[%s12 + $0x1f0] sm:$0xff]
      %v1752 = vld [vmem:[%s12 + $0x1f8] sm:$0xff]
      %v1753 = vld [vmem:[%s12 + $0x200] sm:$0xff]
      %v1754 = vld [vmem:[%s12 + $0x208] sm:$0xff]
      %v1755 = vld [vmem:[%s12 + $0x210] sm:$0xff]
      %v1756 = vld [vmem:[%s12 + $0x218] sm:$0xff]
      %v1757 = vld [vmem:[%s12 + $0x220] sm:$0xff]
      %v1758 = vld [vmem:[%s12 + $0x228] sm:$0xff]
      %v1759 = vld [vmem:[%s12 + $0x230] sm:$0xff]
      %v1760 = vld [vmem:[%s12 + $0x238] sm:$0xff]
      %v1761 = vld [vmem:[#allocation2] sm:$0x1]
      %1763 = vset.pattern.permute.xlu0 0
      %1764 = vperm.xlu0 %1763, %v1761
      %v1765 = vpop.permute.xlu0 %1764
      %v1767 = vperm.slane %v1765, 0
      %v1769 = vsel %vm725, %v1687, 0
      %1771 = vmatpush.msra.mxu0 %v1719
      %1772 = vmatpush.msra.mxu0 %v1717
      %1773 = vmatpush.msra.mxu0 %v1715
      %1774 = vmatpush.msra.mxu0 %v1713
      %1775 = vmatpush.msra.mxu0 %v1711
      %1776 = vmatpush.msra.mxu0 %v1709
      %1777 = vmatpush.msra.mxu0 %v1707
      %1778 = vmatpush.msra.mxu0 %v1705
      %1779 = vmatpush.msra.mxu0 %v1703
      %1780 = vmatpush.msra.mxu0 %v1701
      %1781 = vmatpush.msra.mxu0 %v1699
      %1782 = vmatpush.msra.mxu0 %v1697
      %1783 = vmatpush.msra.mxu0 %v1695
      %1784 = vmatpush.msra.mxu0 %v1693
      %1785 = vmatpush.msra.mxu0 %v1691
      %1786 = vmatpush.msra.mxu0 %v1689
      %1787 = vmatmul.f32.gmra.mxu0 %v1647
      %v1788 = vpop.f32.mrf.mxu0
      %v1789 = vadd.f32 %v1767, %v1788
      %1790 = vdwg.mxu0
      %1791 = vmatpush.msra.mxu0 %v1751
      %1792 = vmatpush.msra.mxu0 %v1749
      %1793 = vmatpush.msra.mxu0 %v1747
      %1794 = vmatpush.msra.mxu0 %v1745
      %1795 = vmatpush.msra.mxu0 %v1743
      %1796 = vmatpush.msra.mxu0 %v1741
      %1797 = vmatpush.msra.mxu0 %v1739
      %1798 = vmatpush.msra.mxu0 %v1737
      %1799 = vmatpush.msra.mxu0 %v1735
      %1800 = vmatpush.msra.mxu0 %v1733
      %1801 = vmatpush.msra.mxu0 %v1731
      %1802 = vmatpush.msra.mxu0 %v1729
      %1803 = vmatpush.msra.mxu0 %v1727
      %1804 = vmatpush.msra.mxu0 %v1725
      %1805 = vmatpush.msra.mxu0 %v1723
      %1806 = vmatpush.msra.mxu0 %v1721
      %1807 = vmatmul.f32.gmra.mxu0 %v1667
      %v1808 = vpop.f32.mrf.mxu0
      %v1809 = vadd.f32 %v1789, %v1808
      %1810 = vdwg.mxu0
      %1811 = vmatpush.msra.mxu0 0.0
      %1812 = vmatpush.msra.mxu0 0.0
      %1813 = vmatpush.msra.mxu0 0.0
      %1814 = vmatpush.msra.mxu0 0.0
      %1815 = vmatpush.msra.mxu0 0.0
      %1816 = vmatpush.msra.mxu0 0.0
      %1817 = vmatpush.msra.mxu0 0.0
      %1818 = vmatpush.msra.mxu0 0.0
      %1819 = vmatpush.msra.mxu0 0.0
      %1820 = vmatpush.msra.mxu0 0.0
      %1821 = vmatpush.msra.mxu0 0.0
      %1822 = vmatpush.msra.mxu0 0.0
      %1823 = vmatpush.msra.mxu0 %v1759
      %1824 = vmatpush.msra.mxu0 %v1757
      %1825 = vmatpush.msra.mxu0 %v1755
      %1826 = vmatpush.msra.mxu0 %v1753
      %1827 = vmatmul.f32.gmra.mxu0 %v1769
      %v1828 = vpop.f32.mrf.mxu0
      %v1829 = vadd.f32 %v1809, %v1828
      %1830 = vdwg.mxu0
      %1831 = vmatpush.msra.mxu0 %v1720
      %1832 = vmatpush.msra.mxu0 %v1718
      %1833 = vmatpush.msra.mxu0 %v1716
      %1834 = vmatpush.msra.mxu0 %v1714
      %1835 = vmatpush.msra.mxu0 %v1712
      %1836 = vmatpush.msra.mxu0 %v1710
      %1837 = vmatpush.msra.mxu0 %v1708
      %1838 = vmatpush.msra.mxu0 %v1706
      %1839 = vmatpush.msra.mxu0 %v1704
      %1840 = vmatpush.msra.mxu0 %v1702
      %1841 = vmatpush.msra.mxu0 %v1700
      %1842 = vmatpush.msra.mxu0 %v1698
      %1843 = vmatpush.msra.mxu0 %v1696
      %1844 = vmatpush.msra.mxu0 %v1694
      %1845 = vmatpush.msra.mxu0 %v1692
      %1846 = vmatpush.msra.mxu0 %v1690
      %1847 = vmatmul.f32.gmra.mxu0 %v1647
      %v1848 = vpop.f32.mrf.mxu0
      %v1849 = vadd.f32 %v1767, %v1848
      %1850 = vdwg.mxu0
      %1851 = vmatpush.msra.mxu0 %v1752
      %1852 = vmatpush.msra.mxu0 %v1750
      %1853 = vmatpush.msra.mxu0 %v1748
      %1854 = vmatpush.msra.mxu0 %v1746
      %1855 = vmatpush.msra.mxu0 %v1744
      %1856 = vmatpush.msra.mxu0 %v1742
      %1857 = vmatpush.msra.mxu0 %v1740
      %1858 = vmatpush.msra.mxu0 %v1738
      %1859 = vmatpush.msra.mxu0 %v1736
      %1860 = vmatpush.msra.mxu0 %v1734
      %1861 = vmatpush.msra.mxu0 %v1732
      %1862 = vmatpush.msra.mxu0 %v1730
      %1863 = vmatpush.msra.mxu0 %v1728
      %1864 = vmatpush.msra.mxu0 %v1726
      %1865 = vmatpush.msra.mxu0 %v1724
      %1866 = vmatpush.msra.mxu0 %v1722
      %1867 = vmatmul.f32.gmra.mxu0 %v1667
      %v1868 = vpop.f32.mrf.mxu0
      %v1869 = vadd.f32 %v1849, %v1868
      %1870 = vdwg.mxu0
      %1871 = vmatpush.msra.mxu0 0.0
      %1872 = vmatpush.msra.mxu0 0.0
      %1873 = vmatpush.msra.mxu0 0.0
      %1874 = vmatpush.msra.mxu0 0.0
      %1875 = vmatpush.msra.mxu0 0.0
      %1876 = vmatpush.msra.mxu0 0.0
      %1877 = vmatpush.msra.mxu0 0.0
      %1878 = vmatpush.msra.mxu0 0.0
      %1879 = vmatpush.msra.mxu0 0.0
      %1880 = vmatpush.msra.mxu0 0.0
      %1881 = vmatpush.msra.mxu0 0.0
      %1882 = vmatpush.msra.mxu0 0.0
      %1883 = vmatpush.msra.mxu0 %v1760
      %1884 = vmatpush.msra.mxu0 %v1758
      %1885 = vmatpush.msra.mxu0 %v1756
      %1886 = vmatpush.msra.mxu0 %v1754
      %1887 = vmatmul.f32.gmra.mxu0 %v1769
      %v1888 = vpop.f32.mrf.mxu0
      %v1889 = vadd.f32 %v1869, %v1888
      %1890 = vdwg.mxu0
      %v1893 = vrot.slane %v1889, 7
      %vm1894 = vcmask 1040384
      %v1895 = vsel %vm1894, %v1829, %v1893
      %v1897 = vlaneseq
      %vm1898 = vcmp.ge.s32.totalorder %v1897, 0
      %vm1899 = vcmp.lt.s32.totalorder %v1897, 256
      %vm1900 = vmand %vm1898, %vm1899
      %1901 = vst.msk [vmem:[%s440] sm:$0x3] %vm1900, %v1895
      %p1902 = scmp.lt.s32.totalorder %s26, 1
      %s1903 = scalar_select %p1902, %s26, 1
      %s1904 = smul.addr %s1903, 2
      %s1905 = scalar_lea.vmem %s13, %s1904
      // Predicated region
      $region73: #{seg_model_forward.1} parent=71 // pred_check
        %p1906 = pneg %p322
      $region74: #{seg_model_forward.1} parent=71 // pred_check_branch
        %1908 = sbr.rel (%p1906) target = $region76
      $region75: #{seg_model_forward.1} parent=71 // pred_region
        _
      $region76: #{seg_model_forward.1} parent=71 // pred_fallthru
        _
    $region72: #{seg_model_forward.1} parent=5 // pred_fallthru
      _
    %p1909 = scmp.le.s32.totalorder 2, %s21
    // Predicated region
    $region77: #{seg_model_forward.1} parent=5 // pred_check
      %p1910 = pneg %p1909
    $region78: #{seg_model_forward.1} parent=5 // pred_check_branch
      %1912 = sbr.rel (%p1910) target = $region80
    $region79: #{seg_model_forward.1} parent=5 // pred_region
      %s1913 = ssub.s32 %s21, 2
      // Predicated region
      $region81: #{seg_model_forward.1} parent=79 // pred_check
        %p1914 = pneg %p328
      $region82: #{seg_model_forward.1} parent=79 // pred_check_branch
        %1916 = sbr.rel (%p1914) target = $region84
      $region83: #{seg_model_forward.1} parent=79 // pred_region
        %p1917 = scmp.lt.s32.totalorder %s27, 1
        %s1918 = scalar_select %p1917, %s27, 1
        %s1919 = smul.addr %s1918, 2
        %s1920 = scalar_lea.vmem %s13, %s1919
      $region84: #{seg_model_forward.1} parent=79 // pred_fallthru
        _
    $region80: #{seg_model_forward.1} parent=5 // pred_fallthru
      _
  $region6: #{seg_model_forward.1} parent=0 // loop_footer
    %s25 = sadd.s32 1, %s21
  $region7: #{seg_model_forward.1} parent=0 // loop_footer_branch
    %20 = sbr.rel target = $region3
  $region8: #{seg_model_forward.1} parent=0 // loop_exit
    _

</llo_original>
